<compile_context>
chip_gen: v6e
topology: v6e:2x2x1
jax: 0.10.0
libtpu: 0.0.40
codegen_flags: <defaults>
</compile_context>

<pallas_src>
import functools

import jax
import jax.numpy as jnp
from jax.experimental import pallas as pl
from jax.experimental.pallas import tpu as pltpu


def _linear_bias_residual_kernel(x_ref, w_ref, b_ref, res_ref, o_ref):
    """One M-block of out = x @ w + b + res.

    x_ref:   (tm, H_in)    f32 activation tile (cast to bf16 in-kernel for MXU)
    w_ref:   (H_in, H_out) bf16 weight (already [in, out], resident)
    b_ref:   (1,  H_out)   f32 bias
    res_ref: (tm, H_out)   f32 residual tile (x436, aliased with output)
    o_ref:   (tm, H_out)   f32 output tile
    """
    x_bf16 = x_ref[...].astype(jnp.bfloat16)        # VPU cast, hides under DMA
    acc = jnp.dot(x_bf16, w_ref[...], preferred_element_type=jnp.float32)
    # TODO(synk): dropout(p=0.1) is identity (eval mode); training-mode dropout
    # would need pltpu.prng_seed + pltpu.prng_random_bits mask/scale.
    o_ref[...] = (acc + b_ref[...] + res_ref[...]).astype(o_ref.dtype)


def prepare_linear_weight(weight):
    """Call ONCE at model load: PyTorch [out, in] f32 -> bf16 [in, out]."""
    return weight.T.astype(jnp.bfloat16)


@functools.partial(
    jax.jit, static_argnames=("tm",), donate_argnames=("x436",)
)
def linear_dropout_add(x464, x436, w_t_bf16, bias, *, tm=96):
    """x464, x436: [B, S, H] f32; w_t_bf16: [H_in, H_out] bf16; bias: [H_out]."""
    B, S, H_in = x464.shape
    H_out = w_t_bf16.shape[1]
    M = B * S

    x2d = x464.reshape(M, H_in)                  # f32, cast to bf16 in-kernel
    r2d = x436.reshape(M, H_out)                 # f32 residual (aliased w/ output)
    b2d = bias.reshape(1, H_out).astype(jnp.float32)

    tm = min(tm, M)
    assert tm % 16 == 0 or tm == M, (
        "tm must be a multiple of 16 (bf16 sublane packing) or the full M"
    )

    grid = (pl.cdiv(M, tm),)                     # single parallel M axis

    cost = pl.CostEstimate(
        flops=2 * M * H_in * H_out,
        transcendentals=0,
        bytes_accessed=(
            M * H_in * 4            # x (f32)
            + H_in * H_out * 2      # W.T (bf16)
            + H_out * 4             # bias
            + M * H_out * 4         # residual read
            + M * H_out * 4         # output write
        ),
    )

    out = pl.pallas_call(
        _linear_bias_residual_kernel,
        out_shape=jax.ShapeDtypeStruct((M, H_out), x436.dtype),
        grid_spec=pltpu.PrefetchScalarGridSpec(
            num_scalar_prefetch=0,
            grid=grid,
            in_specs=[
                pl.BlockSpec((tm, H_in), lambda i: (i, 0)),      # x (f32)
                pl.BlockSpec((H_in, H_out), lambda i: (0, 0)),   # W.T (bf16, resident)
                pl.BlockSpec((1, H_out), lambda i: (0, 0)),      # bias
                pl.BlockSpec((tm, H_out), lambda i: (i, 0)),     # residual
            ],
            out_specs=pl.BlockSpec((tm, H_out), lambda i: (i, 0)),
        ),
        compiler_params=pltpu.CompilerParams(
            dimension_semantics=("parallel",),
        ),
        input_output_aliases={3: 0},             # output reuses the residual buffer
        cost_estimate=cost,
    )(x2d, w_t_bf16, b2d, r2d)

    return out.reshape(B, S, H_out)


if __name__ == "__main__":
    B, S, H = 1, 384, 768   # shapes implied by the module (Linear 768 -> 768)

    key = jax.random.PRNGKey(0)
    k1, k2, k3, k4 = jax.random.split(key, 4)

    x464 = jax.random.normal(k1, (B, S, H), dtype=jnp.float32)
    x436 = jax.random.normal(k2, (B, S, H), dtype=jnp.float32)
    # Deterministic "Linear(768, 768)" parameters (PyTorch layout: [out, in]).
    bound = 1.0 / (H ** 0.5)
    weight = jax.random.uniform(k3, (H, H), dtype=jnp.float32, minval=-bound, maxval=bound)
    bias = jax.random.uniform(k4, (H,), dtype=jnp.float32, minval=-bound, maxval=bound)

    # One-time (model-load) weight prep: transpose + bf16 cast, not per-call.
    w_t_bf16 = prepare_linear_weight(weight)
    w_t_bf16 = jax.block_until_ready(w_t_bf16)

    # Compute the f32 reference BEFORE the kernel call: x436 is donated and its
    # buffer may be clobbered (aliased with the output) afterwards.
    ref = x436 + (x464 @ weight.T + bias)
    ref = jax.block_until_ready(ref)

    out = linear_dropout_add(x464, x436, w_t_bf16, bias)
    out = jax.block_until_ready(out)

    assert out.shape == (B, S, H)
    # Kernel feeds bf16 operands to the MXU with f32 accumulation, so the
    # tolerance vs the f32 reference is loosened accordingly.
    max_err = float(jnp.max(jnp.abs(out - ref)))
    assert jnp.allclose(out, ref, atol=2e-2, rtol=2e-2), (
        f"mismatch vs reference (max abs err {max_err})"
    )

    print("KERNEL_OK")
</pallas_src>

<mosaic_0001>
module attributes {stable_mosaic.version = 11 : i64} {
  func.func @_linear_bias_residual_kernel(%arg0: i32, %arg1: memref<96x768xf32, #tpu.memory_space<vmem>>, %arg2: memref<768x768xbf16, #tpu.memory_space<vmem>>, %arg3: memref<1x768xf32, #tpu.memory_space<vmem>>, %arg4: memref<96x768xf32, #tpu.memory_space<vmem>>, %arg5: memref<96x768xf32, #tpu.memory_space<vmem>>) attributes {dimension_semantics = [#tpu.dimension_semantics<parallel>], iteration_bounds = array<i64: 4>, scalar_prefetch = 0 : i64, scratch_operands = 0 : i64, tpu.core_type = #tpu.core_type<tc>, window_params = [{transform_indices = @transform_0, window_bounds = array<i64: 96, 768>}, {pipeline_mode = #tpu.pipeline_mode<synchronous>, transform_indices = @transform_1, window_bounds = array<i64: 768, 768>}, {pipeline_mode = #tpu.pipeline_mode<synchronous>, transform_indices = @transform_2, window_bounds = array<i64: 1, 768>}, {transform_indices = @transform_3, window_bounds = array<i64: 96, 768>}, {transform_indices = @transform_4, window_bounds = array<i64: 96, 768>}]} {
    %c0 = arith.constant 0 : index
    %c0_0 = arith.constant 0 : index
    %0 = vector.load %arg1[%c0, %c0_0] : memref<96x768xf32, #tpu.memory_space<vmem>>, vector<96x768xf32>
    %1 = arith.truncf %0 : vector<96x768xf32> to vector<96x768xbf16>
    %c0_1 = arith.constant 0 : index
    %c0_2 = arith.constant 0 : index
    %2 = vector.load %arg2[%c0_1, %c0_2] : memref<768x768xbf16, #tpu.memory_space<vmem>>, vector<768x768xbf16>
    %cst = arith.constant dense<0.000000e+00> : vector<96x768xf32>
    %3 = tpu.matmul %1, %2, %cst {dimension_numbers = #tpu.dot_dimension_numbers<[1], [0], [0], [1], [0, 0, 1, 1], [], []>} : vector<96x768xbf16>, vector<768x768xbf16>, vector<96x768xf32> -> vector<96x768xf32>
    %c0_3 = arith.constant 0 : index
    %c0_4 = arith.constant 0 : index
    %4 = vector.load %arg3[%c0_3, %c0_4] : memref<1x768xf32, #tpu.memory_space<vmem>>, vector<1x768xf32>
    %5 = vector.broadcast %4 : vector<1x768xf32> to vector<96x768xf32>
    %6 = arith.addf %3, %5 : vector<96x768xf32>
    %c0_5 = arith.constant 0 : index
    %c0_6 = arith.constant 0 : index
    %7 = vector.load %arg4[%c0_5, %c0_6] : memref<96x768xf32, #tpu.memory_space<vmem>>, vector<96x768xf32>
    %8 = arith.addf %6, %7 : vector<96x768xf32>
    %c0_7 = arith.constant 0 : index
    %c0_8 = arith.constant 0 : index
    %9 = vector.load %arg5[%c0_7, %c0_8] : memref<96x768xf32, #tpu.memory_space<vmem>>, vector<96x768xf32>
    tpu.vector_store %arg5[%c0_7, %c0_8], %8 {strides = array<i32>} : memref<96x768xf32, #tpu.memory_space<vmem>>, vector<96x768xf32>,
    return
  }
  func.func @transform_0(%arg0: i32) -> (i32, i32) {
    %c0_i32 = arith.constant 0 : i32
    %c0_i32_0 = arith.constant 0 : i32
    return %arg0, %c0_i32 : i32, i32
  }
  func.func @transform_1(%arg0: i32) -> (i32, i32) {
    %c0_i32 = arith.constant 0 : i32
    %c0_i32_0 = arith.constant 0 : i32
    %c0_i32_1 = arith.constant 0 : i32
    return %c0_i32, %c0_i32_0 : i32, i32
  }
  func.func @transform_2(%arg0: i32) -> (i32, i32) {
    %c0_i32 = arith.constant 0 : i32
    %c0_i32_0 = arith.constant 0 : i32
    %c0_i32_1 = arith.constant 0 : i32
    return %c0_i32, %c0_i32_0 : i32, i32
  }
  func.func @transform_3(%arg0: i32) -> (i32, i32) {
    %c0_i32 = arith.constant 0 : i32
    %c0_i32_0 = arith.constant 0 : i32
    return %arg0, %c0_i32 : i32, i32
  }
  func.func @transform_4(%arg0: i32) -> (i32, i32) {
    %c0_i32 = arith.constant 0 : i32
    %c0_i32_0 = arith.constant 0 : i32
    return %arg0, %c0_i32 : i32, i32
  }
}

</mosaic_0001>

<llo_original>
// kernel: linear_dropout_add.1
$region0: #{linear_dropout_add.1}
  #allocation0 [shape = 'u32[]', space=smem, size = 0x4, offset = 0x4, fixed_abs, tag = 'smem constant byte address 0x4 - core index']
  #allocation1 [shape = 'u32[144,128]{1,0:T(1,128)}', space=vmem, size = 0x12000, scoped, tag = 'internal scratch']
  %s0 = inlined_call_operand.hbm [shape: f32[384,768], index: 0, kind: input, shape index: {}]
  %s1 = inlined_call_operand.hbm [shape: bf16[768,768], index: 1, kind: input, shape index: {}]
  %s2 = inlined_call_operand.vmem [shape: f32[1,768], index: 2, kind: input, shape index: {}]
  %s3 = inlined_call_operand.hbm [shape: f32[384,768], index: 3, kind: input, shape index: {}, may-alias: {3,4}]
  %s4 = inlined_call_operand.hbm [shape: f32[384,768], index: 4, kind: output, shape index: {}, may-alias: {3,4}]
  %s5 = sld [smem:[#allocation0]]
  $region61: #{linear_dropout_add.1} parent=0
    _
  %s7 = ssub.s32 1, %s5
  %s8 = scalar_select 0, %s7, %s5
  $region1: #{linear_dropout_add.1} parent=0
    #allocation2 [shape = 'u8[589824]{0}', space=vmem, size = 0x90000, scoped, tag = 'input window, operand 0']
    #allocation3 [shape = 's32[2]{0}', space=sflag, size = 0x8, scoped, tag = 'scoped memory for linear_dropout_add.1']
    #allocation4 [shape = 's32[2]{0}', space=sflag, size = 0x8, scoped, tag = 'scoped memory for linear_dropout_add.1']
    #allocation5 [shape = 'u8[1179648]{0}', space=vmem, size = 0x120000, scoped, tag = 'input window, operand 1, single buffered']
    #allocation6 [shape = 's32[1]{0}', space=sflag, size = 0x4, scoped, tag = 'scoped memory for linear_dropout_add.1']
    #allocation7 [shape = 'u8[589824]{0}', space=vmem, size = 0x90000, scoped, tag = 'input window, operand 3']
    #allocation8 [shape = 'u8[589824]{0}', space=vmem, size = 0x90000, scoped, tag = 'output window, operand 0']
    %9 = vsyncpa [#allocation3], 0
    %s10 = scalar_lea.sflag [#allocation3], 1
    %11 = vsyncpa %s10, 0
    %12 = vsyncpa [#allocation6], 0
    %13 = vsyncpa [#allocation4], 0
    %s14 = scalar_lea.sflag [#allocation4], 1
    %15 = vsyncpa %s14, 0
    loop: start=0, step=1, limit=6
    $region2: #{linear_dropout_add.1} parent=1 // loop_pre_header
      _
    $region3: #{linear_dropout_add.1} parent=1 // loop_header
      %s17 = sphi 0, %s21
      %p18 = scmp.ge.s32.totalorder %s17, 6
      %s27 = sphi 0, %s29
      %s30 = sphi 0, %s27
      %s31 = sphi 0, %s30
      %s47 = sphi 0, %s31
      %s51 = sphi 0, %s51
      %s53 = sphi 0, %s51
      %s54 = sphi 0, %s53
      %s68 = sphi 0, %s54
      %s72 = sphi 0, %s72
      %s74 = sphi 0, %s72
      %s75 = sphi 0, %s74
      %s89 = sphi 0, %s75
      %s95 = sphi 0, %s97
      %s98 = sphi 0, %s95
      %s99 = sphi 0, %s98
      %s115 = sphi 0, %s99
      %s121 = sphi 0, %s123
      %s124 = sphi 0, %s121
      %s125 = sphi 0, %s124
      %s141 = sphi 0, %s125
    $region4: #{linear_dropout_add.1} parent=1 // loop_header_branch
      %20 = sbr.rel (%p18) target = $region8
    $region5: #{linear_dropout_add.1} parent=1 // loop_body
      %s22 = ssub.s32 %s17, 1
      %s23 = ssub.s32 %s17, 2
      %s24 = sadd.s32 %s17, 1
      %s25 = ssub.s32 %s17, %s24
      %p26 = scmp.eq.s32.totalorder %s25, 0
      %s28 = sadd.s32 %s27, 1
      %s29 = scalar_select %p26, %s27, %s28
      %p32 = pneg %p26
      %p33 = scmp.eq.s32.totalorder %s17, 3
      %p34 = por %p32, %p33
      %p35 = scmp.ne.s32.totalorder %s27, %s30
      %p36 = scmp.eq.s32.totalorder %s17, 0
      %p37 = por %p35, %p36
      %p38 = scmp.ne.s32.totalorder %s27, %s30
      %p39 = scmp.eq.s32.totalorder %s22, 3
      %p40 = por %p38, %p39
      %p41 = scmp.ne.s32.totalorder %s30, %s31
      %p42 = scmp.eq.s32.totalorder %s22, 0
      %p43 = por %p41, %p42
      %p44 = scmp.ne.s32.totalorder %s30, %s31
      %p45 = scmp.eq.s32.totalorder %s23, 3
      %p46 = por %p44, %p45
      %p48 = scmp.ne.s32.totalorder %s31, %s47
      %p49 = scmp.eq.s32.totalorder %s23, 0
      %p50 = por %p48, %p49
      %s52 = sadd.s32 %s51, 1
      %p55 = scmp.eq.s32.totalorder %s17, 3
      %p56 = scmp.ne.s32.totalorder %s51, %s53
      %p57 = scmp.eq.s32.totalorder %s17, 0
      %p58 = por %p56, %p57
      %p59 = scmp.ne.s32.totalorder %s51, %s53
      %p60 = scmp.eq.s32.totalorder %s22, 3
      %p61 = por %p59, %p60
      %p62 = scmp.ne.s32.totalorder %s53, %s54
      %p63 = scmp.eq.s32.totalorder %s22, 0
      %p64 = por %p62, %p63
      %p65 = scmp.ne.s32.totalorder %s53, %s54
      %p66 = scmp.eq.s32.totalorder %s23, 3
      %p67 = por %p65, %p66
      %p69 = scmp.ne.s32.totalorder %s54, %s68
      %p70 = scmp.eq.s32.totalorder %s23, 0
      %p71 = por %p69, %p70
      %s73 = sadd.s32 %s72, 1
      %p76 = scmp.eq.s32.totalorder %s17, 3
      %p77 = scmp.ne.s32.totalorder %s72, %s74
      %p78 = scmp.eq.s32.totalorder %s17, 0
      %p79 = por %p77, %p78
      %p80 = scmp.ne.s32.totalorder %s72, %s74
      %p81 = scmp.eq.s32.totalorder %s22, 3
      %p82 = por %p80, %p81
      %p83 = scmp.ne.s32.totalorder %s74, %s75
      %p84 = scmp.eq.s32.totalorder %s22, 0
      %p85 = por %p83, %p84
      %p86 = scmp.ne.s32.totalorder %s74, %s75
      %p87 = scmp.eq.s32.totalorder %s23, 3
      %p88 = por %p86, %p87
      %p90 = scmp.ne.s32.totalorder %s75, %s89
      %p91 = scmp.eq.s32.totalorder %s23, 0
      %p92 = por %p90, %p91
      %s93 = ssub.s32 %s17, %s24
      %p94 = scmp.eq.s32.totalorder %s93, 0
      %s96 = sadd.s32 %s95, 1
      %s97 = scalar_select %p94, %s95, %s96
      %p100 = pneg %p94
      %p101 = scmp.eq.s32.totalorder %s17, 3
      %p102 = por %p100, %p101
      %p103 = scmp.ne.s32.totalorder %s95, %s98
      %p104 = scmp.eq.s32.totalorder %s17, 0
      %p105 = por %p103, %p104
      %p106 = scmp.ne.s32.totalorder %s95, %s98
      %p107 = scmp.eq.s32.totalorder %s22, 3
      %p108 = por %p106, %p107
      %p109 = scmp.ne.s32.totalorder %s98, %s99
      %p110 = scmp.eq.s32.totalorder %s22, 0
      %p111 = por %p109, %p110
      %p112 = scmp.ne.s32.totalorder %s98, %s99
      %p113 = scmp.eq.s32.totalorder %s23, 3
      %p114 = por %p112, %p113
      %p116 = scmp.ne.s32.totalorder %s99, %s115
      %p117 = scmp.eq.s32.totalorder %s23, 0
      %p118 = por %p116, %p117
      %s119 = ssub.s32 %s17, %s24
      %p120 = scmp.eq.s32.totalorder %s119, 0
      %s122 = sadd.s32 %s121, 1
      %s123 = scalar_select %p120, %s121, %s122
      %p126 = pneg %p120
      %p127 = scmp.eq.s32.totalorder %s17, 3
      %p128 = por %p126, %p127
      %p129 = scmp.ne.s32.totalorder %s121, %s124
      %p130 = scmp.eq.s32.totalorder %s17, 0
      %p131 = por %p129, %p130
      %p132 = scmp.ne.s32.totalorder %s121, %s124
      %p133 = scmp.eq.s32.totalorder %s22, 3
      %p134 = por %p132, %p133
      %p135 = scmp.ne.s32.totalorder %s124, %s125
      %p136 = scmp.eq.s32.totalorder %s22, 0
      %p137 = por %p135, %p136
      %p138 = scmp.ne.s32.totalorder %s124, %s125
      %p139 = scmp.eq.s32.totalorder %s23, 3
      %p140 = por %p138, %p139
      %p142 = scmp.ne.s32.totalorder %s125, %s141
      %p143 = scmp.eq.s32.totalorder %s23, 0
      %p144 = por %p142, %p143
      %p145 = scmp.le.s32.totalorder 1, %s17
      %p146 = scmp.lt.s32.totalorder %s17, 5
      %p147 = pnand %p145, %p146
      %p148 = pneg %p147
      // Predicated region
      $region9: #{linear_dropout_add.1} parent=5 // pred_check
        _
      $region10: #{linear_dropout_add.1} parent=5 // pred_check_branch
        %150 = sbr.rel (%p147) target = $region12
      $region11: #{linear_dropout_add.1} parent=5 // pred_region
        %s151 = ssub.s32 %s17, 1
        // Predicated region
        $region13: #{linear_dropout_add.1} parent=11 // pred_check
          %p152 = pneg %p64
        $region14: #{linear_dropout_add.1} parent=11 // pred_check_branch
          %154 = sbr.rel (%p152) target = $region16
        $region15: #{linear_dropout_add.1} parent=11 // pred_region
          %s156 = ssub.s32 36864, 36864
          %157 = vsyncadd [#allocation6], %s156
          %s158 = sshll.u32 [#allocation5], 4
          %s159 = int_to_ptr.vmem [resolvable:$true] %s158
          %164 = dma.hbm_to_vmem [thread:$0]  %s1, 36864, %s159, [#allocation6], 384, 384, 24
        $region16: #{linear_dropout_add.1} parent=11 // pred_fallthru
          _
        // Predicated region
        $region17: #{linear_dropout_add.1} parent=11 // pred_check
          %p165 = pneg %p85
        $region18: #{linear_dropout_add.1} parent=11 // pred_check_branch
          %167 = sbr.rel (%p165) target = $region20
        $region19: #{linear_dropout_add.1} parent=11 // pred_region
          _
        $region20: #{linear_dropout_add.1} parent=11 // pred_fallthru
          _
      $region12: #{linear_dropout_add.1} parent=5 // pred_fallthru
        _
      %p168 = scmp.lt.s32.totalorder %s17, 4
      // Predicated region
      $region21: #{linear_dropout_add.1} parent=5 // pred_check
        %p169 = pneg %p168
      $region22: #{linear_dropout_add.1} parent=5 // pred_check_branch
        %171 = sbr.rel (%p169) target = $region24
      $region23: #{linear_dropout_add.1} parent=5 // pred_region
        // Predicated region
        $region25: #{linear_dropout_add.1} parent=23 // pred_check
          %p172 = pneg %p37
        $region26: #{linear_dropout_add.1} parent=23 // pred_check_branch
          %174 = sbr.rel (%p172) target = $region28
        $region27: #{linear_dropout_add.1} parent=23 // pred_region
          %s175 = sand.u32 %s17, 1
          %s176 = scalar_lea.sflag [#allocation3], %s175
          %s177 = sand.u32 %s27, 1
          %s178 = smul.addr %s177, 576
          %s179 = scalar_lea.vmem [#allocation2], %s178
          %s180 = smul.u32 12, %s17
          %s182 = ssub.s32 9216, 9216
          %183 = vsyncadd %s176, %s182
          %s184 = smul.addr %s180, 6
          %s185 = smul.addr %s184, 128
          %s186 = scalar_lea.hbm %s0, %s185
          %s187 = sshll.u32 %s179, 4
          %s188 = int_to_ptr.vmem [resolvable:$true] %s187
          %193 = dma.hbm_to_vmem [thread:$0]  %s186, 9216, %s188, %s176, 768, 768, 48
        $region28: #{linear_dropout_add.1} parent=23 // pred_fallthru
          _
        // Predicated region
        $region29: #{linear_dropout_add.1} parent=23 // pred_check
          %p194 = pneg %p105
        $region30: #{linear_dropout_add.1} parent=23 // pred_check_branch
          %196 = sbr.rel (%p194) target = $region32
        $region31: #{linear_dropout_add.1} parent=23 // pred_region
          %s197 = sand.u32 %s17, 1
          %s198 = scalar_lea.sflag [#allocation3], %s197
          %s199 = sand.u32 %s95, 1
          %s200 = smul.addr %s199, 576
          %s201 = scalar_lea.vmem [#allocation7], %s200
          %s202 = smul.u32 12, %s17
          %s204 = ssub.s32 9216, 9216
          %205 = vsyncadd %s198, %s204
          %s206 = smul.addr %s202, 6
          %s207 = smul.addr %s206, 128
          %s208 = scalar_lea.hbm %s3, %s207
          %s209 = sshll.u32 %s201, 4
          %s210 = int_to_ptr.vmem [resolvable:$true] %s209
          %215 = dma.hbm_to_vmem [thread:$0]  %s208, 9216, %s210, %s198, 768, 768, 48
        $region32: #{linear_dropout_add.1} parent=23 // pred_fallthru
          _
      $region24: #{linear_dropout_add.1} parent=5 // pred_fallthru
        _
      %p216 = scmp.le.s32.totalorder 1, %s17
      %p217 = scmp.lt.s32.totalorder %s17, 5
      %p218 = pnand %p216, %p217
      %p219 = pneg %p218
      // Predicated region
      $region33: #{linear_dropout_add.1} parent=5 // pred_check
        _
      $region34: #{linear_dropout_add.1} parent=5 // pred_check_branch
        %221 = sbr.rel (%p218) target = $region36
      $region35: #{linear_dropout_add.1} parent=5 // pred_region
        %s222 = ssub.s32 %s17, 1
        %s223 = sand.u32 %s22, 1
        %s224 = scalar_lea.sflag [#allocation3], %s223
        %s225 = sand.u32 %s30, 1
        %s226 = smul.addr %s225, 576
        %s227 = scalar_lea.vmem [#allocation2], %s226
        // Predicated region
        $region37: #{linear_dropout_add.1} parent=35 // pred_check
          %p228 = pneg %p43
        $region38: #{linear_dropout_add.1} parent=35 // pred_check_branch
          %230 = sbr.rel (%p228) target = $region40
        $region39: #{linear_dropout_add.1} parent=35 // pred_region
          %231 = dma.done %s224, 9216
        $region40: #{linear_dropout_add.1} parent=35 // pred_fallthru
          _
        // Predicated region
        $region41: #{linear_dropout_add.1} parent=35 // pred_check
          %p232 = pneg %p64
        $region42: #{linear_dropout_add.1} parent=35 // pred_check_branch
          %234 = sbr.rel (%p232) target = $region44
        $region43: #{linear_dropout_add.1} parent=35 // pred_region
          %235 = dma.done [#allocation6], 36864
        $region44: #{linear_dropout_add.1} parent=35 // pred_fallthru
          _
        %s236 = sand.u32 %s22, 1
        %s237 = scalar_lea.sflag [#allocation3], %s236
        %s238 = sand.u32 %s98, 1
        %s239 = smul.addr %s238, 576
        %s240 = scalar_lea.vmem [#allocation7], %s239
        // Predicated region
        $region45: #{linear_dropout_add.1} parent=35 // pred_check
          %p241 = pneg %p111
        $region46: #{linear_dropout_add.1} parent=35 // pred_check_branch
          %243 = sbr.rel (%p241) target = $region48
        $region47: #{linear_dropout_add.1} parent=35 // pred_region
          %244 = dma.done %s237, 9216
        $region48: #{linear_dropout_add.1} parent=35 // pred_fallthru
          _
        %s245 = sand.u32 %s22, 1
        %s246 = scalar_lea.sflag [#allocation3], %s245
        %s247 = sand.u32 %s30, 1
        %s248 = smul.addr %s247, 576
        %s249 = scalar_lea.vmem [#allocation2], %s248
        %p250 = pneg %p43
        %p251 = pneg %p40
        %p252 = pneg %p64
        %p253 = pneg %p61
        %p254 = pneg %p85
        %p255 = pneg %p82
        %s256 = sand.u32 %s22, 1
        %s257 = scalar_lea.sflag [#allocation3], %s256
        %s258 = sand.u32 %s98, 1
        %s259 = smul.addr %s258, 576
        %s260 = scalar_lea.vmem [#allocation7], %s259
        %p261 = pneg %p111
        %p262 = pneg %p108
        %p263 = pneg %p137
        %p264 = pneg %p134
        %s265 = sand.u32 %s124, 1
        %s266 = scalar_lea.sflag [#allocation4], %s265
        %s267 = sand.u32 %s124, 1
        %s268 = smul.addr %s267, 576
        %s269 = scalar_lea.vmem [#allocation8], %s268
        %s270 = smul.u32 12, %s22
        %s271 = smul.u32 12, %s22
        %s272 = smul.u32 12, %s22
        %v273 = vld [vmem:[%s227] sm:$0xff]
        %v274 = vld [vmem:[%s227 + $0x8] sm:$0xff]
        %v275 = vld [vmem:[%s227 + $0x10] sm:$0xff]
        %v276 = vld [vmem:[%s227 + $0x18] sm:$0xff]
        %v277 = vld [vmem:[%s227 + $0x20] sm:$0xff]
        %v278 = vld [vmem:[%s227 + $0x28] sm:$0xff]
        %v279 = vld [vmem:[%s227 + $0x30] sm:$0xff]
        %v280 = vld [vmem:[%s227 + $0x38] sm:$0xff]
        %v281 = vld [vmem:[%s227 + $0x40] sm:$0xff]
        %v282 = vld [vmem:[%s227 + $0x48] sm:$0xff]
        %v283 = vld [vmem:[%s227 + $0x50] sm:$0xff]
        %v284 = vld [vmem:[%s227 + $0x58] sm:$0xff]
        %v285 = vld [vmem:[%s227 + $0x60] sm:$0xff]
        %v286 = vld [vmem:[%s227 + $0x68] sm:$0xff]
        %v287 = vld [vmem:[%s227 + $0x70] sm:$0xff]
        %v288 = vld [vmem:[%s227 + $0x78] sm:$0xff]
        %v289 = vld [vmem:[%s227 + $0x80] sm:$0xff]
        %v290 = vld [vmem:[%s227 + $0x88] sm:$0xff]
        %v291 = vld [vmem:[%s227 + $0x90] sm:$0xff]
        %v292 = vld [vmem:[%s227 + $0x98] sm:$0xff]
        %v293 = vld [vmem:[%s227 + $0xa0] sm:$0xff]
        %v294 = vld [vmem:[%s227 + $0xa8] sm:$0xff]
        %v295 = vld [vmem:[%s227 + $0xb0] sm:$0xff]
        %v296 = vld [vmem:[%s227 + $0xb8] sm:$0xff]
        %v297 = vld [vmem:[%s227 + $0xc0] sm:$0xff]
        %v298 = vld [vmem:[%s227 + $0xc8] sm:$0xff]
        %v299 = vld [vmem:[%s227 + $0xd0] sm:$0xff]
        %v300 = vld [vmem:[%s227 + $0xd8] sm:$0xff]
        %v301 = vld [vmem:[%s227 + $0xe0] sm:$0xff]
        %v302 = vld [vmem:[%s227 + $0xe8] sm:$0xff]
        %v303 = vld [vmem:[%s227 + $0xf0] sm:$0xff]
        %v304 = vld [vmem:[%s227 + $0xf8] sm:$0xff]
        %v305 = vld [vmem:[%s227 + $0x100] sm:$0xff]
        %v306 = vld [vmem:[%s227 + $0x108] sm:$0xff]
        %v307 = vld [vmem:[%s227 + $0x110] sm:$0xff]
        %v308 = vld [vmem:[%s227 + $0x118] sm:$0xff]
        %v309 = vld [vmem:[%s227 + $0x120] sm:$0xff]
        %v310 = vld [vmem:[%s227 + $0x128] sm:$0xff]
        %v311 = vld [vmem:[%s227 + $0x130] sm:$0xff]
        %v312 = vld [vmem:[%s227 + $0x138] sm:$0xff]
        %v313 = vld [vmem:[%s227 + $0x140] sm:$0xff]
        %v314 = vld [vmem:[%s227 + $0x148] sm:$0xff]
        %v315 = vld [vmem:[%s227 + $0x150] sm:$0xff]
        %v316 = vld [vmem:[%s227 + $0x158] sm:$0xff]
        %v317 = vld [vmem:[%s227 + $0x160] sm:$0xff]
        %v318 = vld [vmem:[%s227 + $0x168] sm:$0xff]
        %v319 = vld [vmem:[%s227 + $0x170] sm:$0xff]
        %v320 = vld [vmem:[%s227 + $0x178] sm:$0xff]
        %v321 = vld [vmem:[%s227 + $0x180] sm:$0xff]
        %v322 = vld [vmem:[%s227 + $0x188] sm:$0xff]
        %v323 = vld [vmem:[%s227 + $0x190] sm:$0xff]
        %v324 = vld [vmem:[%s227 + $0x198] sm:$0xff]
        %v325 = vld [vmem:[%s227 + $0x1a0] sm:$0xff]
        %v326 = vld [vmem:[%s227 + $0x1a8] sm:$0xff]
        %v327 = vld [vmem:[%s227 + $0x1b0] sm:$0xff]
        %v328 = vld [vmem:[%s227 + $0x1b8] sm:$0xff]
        %v329 = vld [vmem:[%s227 + $0x1c0] sm:$0xff]
        %v330 = vld [vmem:[%s227 + $0x1c8] sm:$0xff]
        %v331 = vld [vmem:[%s227 + $0x1d0] sm:$0xff]
        %v332 = vld [vmem:[%s227 + $0x1d8] sm:$0xff]
        %v333 = vld [vmem:[%s227 + $0x1e0] sm:$0xff]
        %v334 = vld [vmem:[%s227 + $0x1e8] sm:$0xff]
        %v335 = vld [vmem:[%s227 + $0x1f0] sm:$0xff]
        %v336 = vld [vmem:[%s227 + $0x1f8] sm:$0xff]
        %v337 = vld [vmem:[%s227 + $0x200] sm:$0xff]
        %v338 = vld [vmem:[%s227 + $0x208] sm:$0xff]
        %v339 = vld [vmem:[%s227 + $0x210] sm:$0xff]
        %v340 = vld [vmem:[%s227 + $0x218] sm:$0xff]
        %v341 = vld [vmem:[%s227 + $0x220] sm:$0xff]
        %v342 = vld [vmem:[%s227 + $0x228] sm:$0xff]
        %v343 = vld [vmem:[%s227 + $0x230] sm:$0xff]
        %v344 = vld [vmem:[%s227 + $0x238] sm:$0xff]
        %v345 = vpack.c.bf16 %v279, %v273
        %v346 = vpack.c.bf16 %v280, %v274
        %v347 = vpack.c.bf16 %v281, %v275
        %v348 = vpack.c.bf16 %v282, %v276
        %v349 = vpack.c.bf16 %v283, %v277
        %v350 = vpack.c.bf16 %v284, %v278
        %v351 = vpack.c.bf16 %v291, %v285
        %v352 = vpack.c.bf16 %v292, %v286
        %v353 = vpack.c.bf16 %v293, %v287
        %v354 = vpack.c.bf16 %v294, %v288
        %v355 = vpack.c.bf16 %v295, %v289
        %v356 = vpack.c.bf16 %v296, %v290
        %v357 = vpack.c.bf16 %v303, %v297
        %v358 = vpack.c.bf16 %v304, %v298
        %v359 = vpack.c.bf16 %v305, %v299
        %v360 = vpack.c.bf16 %v306, %v300
        %v361 = vpack.c.bf16 %v307, %v301
        %v362 = vpack.c.bf16 %v308, %v302
        %v363 = vpack.c.bf16 %v315, %v309
        %v364 = vpack.c.bf16 %v316, %v310
        %v365 = vpack.c.bf16 %v317, %v311
        %v366 = vpack.c.bf16 %v318, %v312
        %v367 = vpack.c.bf16 %v319, %v313
        %v368 = vpack.c.bf16 %v320, %v314
        %v369 = vpack.c.bf16 %v327, %v321
        %v370 = vpack.c.bf16 %v328, %v322
        %v371 = vpack.c.bf16 %v329, %v323
        %v372 = vpack.c.bf16 %v330, %v324
        %v373 = vpack.c.bf16 %v331, %v325
        %v374 = vpack.c.bf16 %v332, %v326
        %v375 = vpack.c.bf16 %v339, %v333
        %v376 = vpack.c.bf16 %v340, %v334
        %v377 = vpack.c.bf16 %v341, %v335
        %v378 = vpack.c.bf16 %v342, %v336
        %v379 = vpack.c.bf16 %v343, %v337
        %v380 = vpack.c.bf16 %v344, %v338
        %v381 = vld [vmem:[#allocation5] sm:$0xff]
        %v382 = vld [vmem:[#allocation5 + $0x8] sm:$0xff]
        %v383 = vld [vmem:[#allocation5 + $0x10] sm:$0xff]
        %v384 = vld [vmem:[#allocation5 + $0x18] sm:$0xff]
        %v385 = vld [vmem:[#allocation5 + $0x20] sm:$0xff]
        %v386 = vld [vmem:[#allocation5 + $0x28] sm:$0xff]
        %v387 = vld [vmem:[#allocation5 + $0x30] sm:$0xff]
        %v388 = vld [vmem:[#allocation5 + $0x38] sm:$0xff]
        %v389 = vld [vmem:[#allocation5 + $0x40] sm:$0xff]
        %v390 = vld [vmem:[#allocation5 + $0x48] sm:$0xff]
        %v391 = vld [vmem:[#allocation5 + $0x50] sm:$0xff]
        %v392 = vld [vmem:[#allocation5 + $0x58] sm:$0xff]
        %v393 = vld [vmem:[#allocation5 + $0x60] sm:$0xff]
        %v394 = vld [vmem:[#allocation5 + $0x68] sm:$0xff]
        %v395 = vld [vmem:[#allocation5 + $0x70] sm:$0xff]
        %v396 = vld [vmem:[#allocation5 + $0x78] sm:$0xff]
        %v397 = vld [vmem:[#allocation5 + $0x80] sm:$0xff]
        %v398 = vld [vmem:[#allocation5 + $0x88] sm:$0xff]
        %v399 = vld [vmem:[#allocation5 + $0x90] sm:$0xff]
        %v400 = vld [vmem:[#allocation5 + $0x98] sm:$0xff]
        %v401 = vld [vmem:[#allocation5 + $0xa0] sm:$0xff]
        %v402 = vld [vmem:[#allocation5 + $0xa8] sm:$0xff]
        %v403 = vld [vmem:[#allocation5 + $0xb0] sm:$0xff]
        %v404 = vld [vmem:[#allocation5 + $0xb8] sm:$0xff]
        %v405 = vld [vmem:[#allocation5 + $0xc0] sm:$0xff]
        %v406 = vld [vmem:[#allocation5 + $0xc8] sm:$0xff]
        %v407 = vld [vmem:[#allocation5 + $0xd0] sm:$0xff]
        %v408 = vld [vmem:[#allocation5 + $0xd8] sm:$0xff]
        %v409 = vld [vmem:[#allocation5 + $0xe0] sm:$0xff]
        %v410 = vld [vmem:[#allocation5 + $0xe8] sm:$0xff]
        %v411 = vld [vmem:[#allocation5 + $0xf0] sm:$0xff]
        %v412 = vld [vmem:[#allocation5 + $0xf8] sm:$0xff]
        %v413 = vld [vmem:[#allocation5 + $0x100] sm:$0xff]
        %v414 = vld [vmem:[#allocation5 + $0x108] sm:$0xff]
        %v415 = vld [vmem:[#allocation5 + $0x110] sm:$0xff]
        %v416 = vld [vmem:[#allocation5 + $0x118] sm:$0xff]
        %v417 = vld [vmem:[#allocation5 + $0x120] sm:$0xff]
        %v418 = vld [vmem:[#allocation5 + $0x128] sm:$0xff]
        %v419 = vld [vmem:[#allocation5 + $0x130] sm:$0xff]
        %v420 = vld [vmem:[#allocation5 + $0x138] sm:$0xff]
        %v421 = vld [vmem:[#allocation5 + $0x140] sm:$0xff]
        %v422 = vld [vmem:[#allocation5 + $0x148] sm:$0xff]
        %v423 = vld [vmem:[#allocation5 + $0x150] sm:$0xff]
        %v424 = vld [vmem:[#allocation5 + $0x158] sm:$0xff]
        %v425 = vld [vmem:[#allocation5 + $0x160] sm:$0xff]
        %v426 = vld [vmem:[#allocation5 + $0x168] sm:$0xff]
        %v427 = vld [vmem:[#allocation5 + $0x170] sm:$0xff]
        %v428 = vld [vmem:[#allocation5 + $0x178] sm:$0xff]
        %v429 = vld [vmem:[#allocation5 + $0x180] sm:$0xff]
        %v430 = vld [vmem:[#allocation5 + $0x188] sm:$0xff]
        %v431 = vld [vmem:[#allocation5 + $0x190] sm:$0xff]
        %v432 = vld [vmem:[#allocation5 + $0x198] sm:$0xff]
        %v433 = vld [vmem:[#allocation5 + $0x1a0] sm:$0xff]
        %v434 = vld [vmem:[#allocation5 + $0x1a8] sm:$0xff]
        %v435 = vld [vmem:[#allocation5 + $0x1b0] sm:$0xff]
        %v436 = vld [vmem:[#allocation5 + $0x1b8] sm:$0xff]
        %v437 = vld [vmem:[#allocation5 + $0x1c0] sm:$0xff]
        %v438 = vld [vmem:[#allocation5 + $0x1c8] sm:$0xff]
        %v439 = vld [vmem:[#allocation5 + $0x1d0] sm:$0xff]
        %v440 = vld [vmem:[#allocation5 + $0x1d8] sm:$0xff]
        %v441 = vld [vmem:[#allocation5 + $0x1e0] sm:$0xff]
        %v442 = vld [vmem:[#allocation5 + $0x1e8] sm:$0xff]
        %v443 = vld [vmem:[#allocation5 + $0x1f0] sm:$0xff]
        %v444 = vld [vmem:[#allocation5 + $0x1f8] sm:$0xff]
        %v445 = vld [vmem:[#allocation5 + $0x200] sm:$0xff]
        %v446 = vld [vmem:[#allocation5 + $0x208] sm:$0xff]
        %v447 = vld [vmem:[#allocation5 + $0x210] sm:$0xff]
        %v448 = vld [vmem:[#allocation5 + $0x218] sm:$0xff]
        %v449 = vld [vmem:[#allocation5 + $0x220] sm:$0xff]
        %v450 = vld [vmem:[#allocation5 + $0x228] sm:$0xff]
        %v451 = vld [vmem:[#allocation5 + $0x230] sm:$0xff]
        %v452 = vld [vmem:[#allocation5 + $0x238] sm:$0xff]
        %v453 = vld [vmem:[#allocation5 + $0x240] sm:$0xff]
        %v454 = vld [vmem:[#allocation5 + $0x248] sm:$0xff]
        %v455 = vld [vmem:[#allocation5 + $0x250] sm:$0xff]
        %v456 = vld [vmem:[#allocation5 + $0x258] sm:$0xff]
        %v457 = vld [vmem:[#allocation5 + $0x260] sm:$0xff]
        %v458 = vld [vmem:[#allocation5 + $0x268] sm:$0xff]
        %v459 = vld [vmem:[#allocation5 + $0x270] sm:$0xff]
        %v460 = vld [vmem:[#allocation5 + $0x278] sm:$0xff]
        %v461 = vld [vmem:[#allocation5 + $0x280] sm:$0xff]
        %v462 = vld [vmem:[#allocation5 + $0x288] sm:$0xff]
        %v463 = vld [vmem:[#allocation5 + $0x290] sm:$0xff]
        %v464 = vld [vmem:[#allocation5 + $0x298] sm:$0xff]
        %v465 = vld [vmem:[#allocation5 + $0x2a0] sm:$0xff]
        %v466 = vld [vmem:[#allocation5 + $0x2a8] sm:$0xff]
        %v467 = vld [vmem:[#allocation5 + $0x2b0] sm:$0xff]
        %v468 = vld [vmem:[#allocation5 + $0x2b8] sm:$0xff]
        %v469 = vld [vmem:[#allocation5 + $0x2c0] sm:$0xff]
        %v470 = vld [vmem:[#allocation5 + $0x2c8] sm:$0xff]
        %v471 = vld [vmem:[#allocation5 + $0x2d0] sm:$0xff]
        %v472 = vld [vmem:[#allocation5 + $0x2d8] sm:$0xff]
        %v473 = vld [vmem:[#allocation5 + $0x2e0] sm:$0xff]
        %v474 = vld [vmem:[#allocation5 + $0x2e8] sm:$0xff]
        %v475 = vld [vmem:[#allocation5 + $0x2f0] sm:$0xff]
        %v476 = vld [vmem:[#allocation5 + $0x2f8] sm:$0xff]
        %v477 = vld [vmem:[#allocation5 + $0x300] sm:$0xff]
        %v478 = vld [vmem:[#allocation5 + $0x308] sm:$0xff]
        %v479 = vld [vmem:[#allocation5 + $0x310] sm:$0xff]
        %v480 = vld [vmem:[#allocation5 + $0x318] sm:$0xff]
        %v481 = vld [vmem:[#allocation5 + $0x320] sm:$0xff]
        %v482 = vld [vmem:[#allocation5 + $0x328] sm:$0xff]
        %v483 = vld [vmem:[#allocation5 + $0x330] sm:$0xff]
        %v484 = vld [vmem:[#allocation5 + $0x338] sm:$0xff]
        %v485 = vld [vmem:[#allocation5 + $0x340] sm:$0xff]
        %v486 = vld [vmem:[#allocation5 + $0x348] sm:$0xff]
        %v487 = vld [vmem:[#allocation5 + $0x350] sm:$0xff]
        %v488 = vld [vmem:[#allocation5 + $0x358] sm:$0xff]
        %v489 = vld [vmem:[#allocation5 + $0x360] sm:$0xff]
        %v490 = vld [vmem:[#allocation5 + $0x368] sm:$0xff]
        %v491 = vld [vmem:[#allocation5 + $0x370] sm:$0xff]
        %v492 = vld [vmem:[#allocation5 + $0x378] sm:$0xff]
        %v493 = vld [vmem:[#allocation5 + $0x380] sm:$0xff]
        %v494 = vld [vmem:[#allocation5 + $0x388] sm:$0xff]
        %v495 = vld [vmem:[#allocation5 + $0x390] sm:$0xff]
        %v496 = vld [vmem:[#allocation5 + $0x398] sm:$0xff]
        %v497 = vld [vmem:[#allocation5 + $0x3a0] sm:$0xff]
        %v498 = vld [vmem:[#allocation5 + $0x3a8] sm:$0xff]
        %v499 = vld [vmem:[#allocation5 + $0x3b0] sm:$0xff]
        %v500 = vld [vmem:[#allocation5 + $0x3b8] sm:$0xff]
        %v501 = vld [vmem:[#allocation5 + $0x3c0] sm:$0xff]
        %v502 = vld [vmem:[#allocation5 + $0x3c8] sm:$0xff]
        %v503 = vld [vmem:[#allocation5 + $0x3d0] sm:$0xff]
        %v504 = vld [vmem:[#allocation5 + $0x3d8] sm:$0xff]
        %v505 = vld [vmem:[#allocation5 + $0x3e0] sm:$0xff]
        %v506 = vld [vmem:[#allocation5 + $0x3e8] sm:$0xff]
        %v507 = vld [vmem:[#allocation5 + $0x3f0] sm:$0xff]
        %v508 = vld [vmem:[#allocation5 + $0x3f8] sm:$0xff]
        %v509 = vld [vmem:[#allocation5 + $0x400] sm:$0xff]
        %v510 = vld [vmem:[#allocation5 + $0x408] sm:$0xff]
        %v511 = vld [vmem:[#allocation5 + $0x410] sm:$0xff]
        %v512 = vld [vmem:[#allocation5 + $0x418] sm:$0xff]
        %v513 = vld [vmem:[#allocation5 + $0x420] sm:$0xff]
        %v514 = vld [vmem:[#allocation5 + $0x428] sm:$0xff]
        %v515 = vld [vmem:[#allocation5 + $0x430] sm:$0xff]
        %v516 = vld [vmem:[#allocation5 + $0x438] sm:$0xff]
        %v517 = vld [vmem:[#allocation5 + $0x440] sm:$0xff]
        %v518 = vld [vmem:[#allocation5 + $0x448] sm:$0xff]
        %v519 = vld [vmem:[#allocation5 + $0x450] sm:$0xff]
        %v520 = vld [vmem:[#allocation5 + $0x458] sm:$0xff]
        %v521 = vld [vmem:[#allocation5 + $0x460] sm:$0xff]
        %v522 = vld [vmem:[#allocation5 + $0x468] sm:$0xff]
        %v523 = vld [vmem:[#allocation5 + $0x470] sm:$0xff]
        %v524 = vld [vmem:[#allocation5 + $0x478] sm:$0xff]
        %v525 = vld [vmem:[#allocation5 + $0x480] sm:$0xff]
        %v526 = vld [vmem:[#allocation5 + $0x488] sm:$0xff]
        %v527 = vld [vmem:[#allocation5 + $0x490] sm:$0xff]
        %v528 = vld [vmem:[#allocation5 + $0x498] sm:$0xff]
        %v529 = vld [vmem:[#allocation5 + $0x4a0] sm:$0xff]
        %v530 = vld [vmem:[#allocation5 + $0x4a8] sm:$0xff]
        %v531 = vld [vmem:[#allocation5 + $0x4b0] sm:$0xff]
        %v532 = vld [vmem:[#allocation5 + $0x4b8] sm:$0xff]
        %v533 = vld [vmem:[#allocation5 + $0x4c0] sm:$0xff]
        %v534 = vld [vmem:[#allocation5 + $0x4c8] sm:$0xff]
        %v535 = vld [vmem:[#allocation5 + $0x4d0] sm:$0xff]
        %v536 = vld [vmem:[#allocation5 + $0x4d8] sm:$0xff]
        %v537 = vld [vmem:[#allocation5 + $0x4e0] sm:$0xff]
        %v538 = vld [vmem:[#allocation5 + $0x4e8] sm:$0xff]
        %v539 = vld [vmem:[#allocation5 + $0x4f0] sm:$0xff]
        %v540 = vld [vmem:[#allocation5 + $0x4f8] sm:$0xff]
        %v541 = vld [vmem:[#allocation5 + $0x500] sm:$0xff]
        %v542 = vld [vmem:[#allocation5 + $0x508] sm:$0xff]
        %v543 = vld [vmem:[#allocation5 + $0x510] sm:$0xff]
        %v544 = vld [vmem:[#allocation5 + $0x518] sm:$0xff]
        %v545 = vld [vmem:[#allocation5 + $0x520] sm:$0xff]
        %v546 = vld [vmem:[#allocation5 + $0x528] sm:$0xff]
        %v547 = vld [vmem:[#allocation5 + $0x530] sm:$0xff]
        %v548 = vld [vmem:[#allocation5 + $0x538] sm:$0xff]
        %v549 = vld [vmem:[#allocation5 + $0x540] sm:$0xff]
        %v550 = vld [vmem:[#allocation5 + $0x548] sm:$0xff]
        %v551 = vld [vmem:[#allocation5 + $0x550] sm:$0xff]
        %v552 = vld [vmem:[#allocation5 + $0x558] sm:$0xff]
        %v553 = vld [vmem:[#allocation5 + $0x560] sm:$0xff]
        %v554 = vld [vmem:[#allocation5 + $0x568] sm:$0xff]
        %v555 = vld [vmem:[#allocation5 + $0x570] sm:$0xff]
        %v556 = vld [vmem:[#allocation5 + $0x578] sm:$0xff]
        %v557 = vld [vmem:[#allocation5 + $0x580] sm:$0xff]
        %v558 = vld [vmem:[#allocation5 + $0x588] sm:$0xff]
        %v559 = vld [vmem:[#allocation5 + $0x590] sm:$0xff]
        %v560 = vld [vmem:[#allocation5 + $0x598] sm:$0xff]
        %v561 = vld [vmem:[#allocation5 + $0x5a0] sm:$0xff]
        %v562 = vld [vmem:[#allocation5 + $0x5a8] sm:$0xff]
        %v563 = vld [vmem:[#allocation5 + $0x5b0] sm:$0xff]
        %v564 = vld [vmem:[#allocation5 + $0x5b8] sm:$0xff]
        %v565 = vld [vmem:[#allocation5 + $0x5c0] sm:$0xff]
        %v566 = vld [vmem:[#allocation5 + $0x5c8] sm:$0xff]
        %v567 = vld [vmem:[#allocation5 + $0x5d0] sm:$0xff]
        %v568 = vld [vmem:[#allocation5 + $0x5d8] sm:$0xff]
        %v569 = vld [vmem:[#allocation5 + $0x5e0] sm:$0xff]
        %v570 = vld [vmem:[#allocation5 + $0x5e8] sm:$0xff]
        %v571 = vld [vmem:[#allocation5 + $0x5f0] sm:$0xff]
        %v572 = vld [vmem:[#allocation5 + $0x5f8] sm:$0xff]
        %v573 = vld [vmem:[#allocation5 + $0x600] sm:$0xff]
        %v574 = vld [vmem:[#allocation5 + $0x608] sm:$0xff]
        %v575 = vld [vmem:[#allocation5 + $0x610] sm:$0xff]
        %v576 = vld [vmem:[#allocation5 + $0x618] sm:$0xff]
        %v577 = vld [vmem:[#allocation5 + $0x620] sm:$0xff]
        %v578 = vld [vmem:[#allocation5 + $0x628] sm:$0xff]
        %v579 = vld [vmem:[#allocation5 + $0x630] sm:$0xff]
        %v580 = vld [vmem:[#allocation5 + $0x638] sm:$0xff]
        %v581 = vld [vmem:[#allocation5 + $0x640] sm:$0xff]
        %v582 = vld [vmem:[#allocation5 + $0x648] sm:$0xff]
        %v583 = vld [vmem:[#allocation5 + $0x650] sm:$0xff]
        %v584 = vld [vmem:[#allocation5 + $0x658] sm:$0xff]
        %v585 = vld [vmem:[#allocation5 + $0x660] sm:$0xff]
        %v586 = vld [vmem:[#allocation5 + $0x668] sm:$0xff]
        %v587 = vld [vmem:[#allocation5 + $0x670] sm:$0xff]
        %v588 = vld [vmem:[#allocation5 + $0x678] sm:$0xff]
        %v589 = vld [vmem:[#allocation5 + $0x680] sm:$0xff]
        %v590 = vld [vmem:[#allocation5 + $0x688] sm:$0xff]
        %v591 = vld [vmem:[#allocation5 + $0x690] sm:$0xff]
        %v592 = vld [vmem:[#allocation5 + $0x698] sm:$0xff]
        %v593 = vld [vmem:[#allocation5 + $0x6a0] sm:$0xff]
        %v594 = vld [vmem:[#allocation5 + $0x6a8] sm:$0xff]
        %v595 = vld [vmem:[#allocation5 + $0x6b0] sm:$0xff]
        %v596 = vld [vmem:[#allocation5 + $0x6b8] sm:$0xff]
        %v597 = vld [vmem:[#allocation5 + $0x6c0] sm:$0xff]
        %v598 = vld [vmem:[#allocation5 + $0x6c8] sm:$0xff]
        %v599 = vld [vmem:[#allocation5 + $0x6d0] sm:$0xff]
        %v600 = vld [vmem:[#allocation5 + $0x6d8] sm:$0xff]
        %v601 = vld [vmem:[#allocation5 + $0x6e0] sm:$0xff]
        %v602 = vld [vmem:[#allocation5 + $0x6e8] sm:$0xff]
        %v603 = vld [vmem:[#allocation5 + $0x6f0] sm:$0xff]
        %v604 = vld [vmem:[#allocation5 + $0x6f8] sm:$0xff]
        %v605 = vld [vmem:[#allocation5 + $0x700] sm:$0xff]
        %v606 = vld [vmem:[#allocation5 + $0x708] sm:$0xff]
        %v607 = vld [vmem:[#allocation5 + $0x710] sm:$0xff]
        %v608 = vld [vmem:[#allocation5 + $0x718] sm:$0xff]
        %v609 = vld [vmem:[#allocation5 + $0x720] sm:$0xff]
        %v610 = vld [vmem:[#allocation5 + $0x728] sm:$0xff]
        %v611 = vld [vmem:[#allocation5 + $0x730] sm:$0xff]
        %v612 = vld [vmem:[#allocation5 + $0x738] sm:$0xff]
        %v613 = vld [vmem:[#allocation5 + $0x740] sm:$0xff]
        %v614 = vld [vmem:[#allocation5 + $0x748] sm:$0xff]
        %v615 = vld [vmem:[#allocation5 + $0x750] sm:$0xff]
        %v616 = vld [vmem:[#allocation5 + $0x758] sm:$0xff]
        %v617 = vld [vmem:[#allocation5 + $0x760] sm:$0xff]
        %v618 = vld [vmem:[#allocation5 + $0x768] sm:$0xff]
        %v619 = vld [vmem:[#allocation5 + $0x770] sm:$0xff]
        %v620 = vld [vmem:[#allocation5 + $0x778] sm:$0xff]
        %v621 = vld [vmem:[#allocation5 + $0x780] sm:$0xff]
        %v622 = vld [vmem:[#allocation5 + $0x788] sm:$0xff]
        %v623 = vld [vmem:[#allocation5 + $0x790] sm:$0xff]
        %v624 = vld [vmem:[#allocation5 + $0x798] sm:$0xff]
        %v625 = vld [vmem:[#allocation5 + $0x7a0] sm:$0xff]
        %v626 = vld [vmem:[#allocation5 + $0x7a8] sm:$0xff]
        %v627 = vld [vmem:[#allocation5 + $0x7b0] sm:$0xff]
        %v628 = vld [vmem:[#allocation5 + $0x7b8] sm:$0xff]
        %v629 = vld [vmem:[#allocation5 + $0x7c0] sm:$0xff]
        %v630 = vld [vmem:[#allocation5 + $0x7c8] sm:$0xff]
        %v631 = vld [vmem:[#allocation5 + $0x7d0] sm:$0xff]
        %v632 = vld [vmem:[#allocation5 + $0x7d8] sm:$0xff]
        %v633 = vld [vmem:[#allocation5 + $0x7e0] sm:$0xff]
        %v634 = vld [vmem:[#allocation5 + $0x7e8] sm:$0xff]
        %v635 = vld [vmem:[#allocation5 + $0x7f0] sm:$0xff]
        %v636 = vld [vmem:[#allocation5 + $0x7f8] sm:$0xff]
        %v637 = vld [vmem:[#allocation5 + $0x800] sm:$0xff]
        %v638 = vld [vmem:[#allocation5 + $0x808] sm:$0xff]
        %v639 = vld [vmem:[#allocation5 + $0x810] sm:$0xff]
        %v640 = vld [vmem:[#allocation5 + $0x818] sm:$0xff]
        %v641 = vld [vmem:[#allocation5 + $0x820] sm:$0xff]
        %v642 = vld [vmem:[#allocation5 + $0x828] sm:$0xff]
        %v643 = vld [vmem:[#allocation5 + $0x830] sm:$0xff]
        %v644 = vld [vmem:[#allocation5 + $0x838] sm:$0xff]
        %v645 = vld [vmem:[#allocation5 + $0x840] sm:$0xff]
        %v646 = vld [vmem:[#allocation5 + $0x848] sm:$0xff]
        %v647 = vld [vmem:[#allocation5 + $0x850] sm:$0xff]
        %v648 = vld [vmem:[#allocation5 + $0x858] sm:$0xff]
        %v649 = vld [vmem:[#allocation5 + $0x860] sm:$0xff]
        %v650 = vld [vmem:[#allocation5 + $0x868] sm:$0xff]
        %v651 = vld [vmem:[#allocation5 + $0x870] sm:$0xff]
        %v652 = vld [vmem:[#allocation5 + $0x878] sm:$0xff]
        %v653 = vld [vmem:[#allocation5 + $0x880] sm:$0xff]
        %v654 = vld [vmem:[#allocation5 + $0x888] sm:$0xff]
        %v655 = vld [vmem:[#allocation5 + $0x890] sm:$0xff]
        %v656 = vld [vmem:[#allocation5 + $0x898] sm:$0xff]
        %v657 = vld [vmem:[#allocation5 + $0x8a0] sm:$0xff]
        %v658 = vld [vmem:[#allocation5 + $0x8a8] sm:$0xff]
        %v659 = vld [vmem:[#allocation5 + $0x8b0] sm:$0xff]
        %v660 = vld [vmem:[#allocation5 + $0x8b8] sm:$0xff]
        %v661 = vld [vmem:[#allocation5 + $0x8c0] sm:$0xff]
        %v662 = vld [vmem:[#allocation5 + $0x8c8] sm:$0xff]
        %v663 = vld [vmem:[#allocation5 + $0x8d0] sm:$0xff]
        %v664 = vld [vmem:[#allocation5 + $0x8d8] sm:$0xff]
        %v665 = vld [vmem:[#allocation5 + $0x8e0] sm:$0xff]
        %v666 = vld [vmem:[#allocation5 + $0x8e8] sm:$0xff]
        %v667 = vld [vmem:[#allocation5 + $0x8f0] sm:$0xff]
        %v668 = vld [vmem:[#allocation5 + $0x8f8] sm:$0xff]
        %v669 = vld [vmem:[%s2] sm:$0x3f]
        %v671 = vlaneseq
        %v672 = vshrl.u32 %v671, 7
        %v673 = vsub.s32 0, %v672
        %v674 = vrot.slane %v669, %v673
        %v675 = vlaneseq
        %v676 = vshrl.u32 %v675, 7
        %v677 = vsub.s32 1, %v676
        %v678 = vrot.slane %v669, %v677
        %v679 = vlaneseq
        %v680 = vshrl.u32 %v679, 7
        %v681 = vsub.s32 2, %v680
        %v682 = vrot.slane %v669, %v681
        %v683 = vlaneseq
        %v684 = vshrl.u32 %v683, 7
        %v685 = vsub.s32 3, %v684
        %v686 = vrot.slane %v669, %v685
        %v687 = vlaneseq
        %v688 = vshrl.u32 %v687, 7
        %v689 = vsub.s32 4, %v688
        %v690 = vrot.slane %v669, %v689
        %v691 = vlaneseq
        %v692 = vshrl.u32 %v691, 7
        %v693 = vsub.s32 5, %v692
        %v694 = vrot.slane %v669, %v693
        %v989 = vunpack.c.l.b16 %v381
        %v990 = vunpack.c.h.b16 %v381
        %v991 = vunpack.c.l.b16 %v382
        %v992 = vunpack.c.h.b16 %v382
        %v993 = vunpack.c.l.b16 %v383
        %v994 = vunpack.c.h.b16 %v383
        %v995 = vunpack.c.l.b16 %v384
        %v996 = vunpack.c.h.b16 %v384
        %v997 = vunpack.c.l.b16 %v385
        %v998 = vunpack.c.h.b16 %v385
        %v999 = vunpack.c.l.b16 %v386
        %v1000 = vunpack.c.h.b16 %v386
        %v1001 = vunpack.c.l.b16 %v387
        %v1002 = vunpack.c.h.b16 %v387
        %v1003 = vunpack.c.l.b16 %v388
        %v1004 = vunpack.c.h.b16 %v388
        %v1005 = vunpack.c.l.b16 %v389
        %v1006 = vunpack.c.h.b16 %v389
        %v1007 = vunpack.c.l.b16 %v390
        %v1008 = vunpack.c.h.b16 %v390
        %v1009 = vunpack.c.l.b16 %v391
        %v1010 = vunpack.c.h.b16 %v391
        %v1011 = vunpack.c.l.b16 %v392
        %v1012 = vunpack.c.h.b16 %v392
        %v1013 = vunpack.c.l.b16 %v393
        %v1014 = vunpack.c.h.b16 %v393
        %v1015 = vunpack.c.l.b16 %v394
        %v1016 = vunpack.c.h.b16 %v394
        %v1017 = vunpack.c.l.b16 %v395
        %v1018 = vunpack.c.h.b16 %v395
        %v1019 = vunpack.c.l.b16 %v396
        %v1020 = vunpack.c.h.b16 %v396
        %v1021 = vunpack.c.l.b16 %v397
        %v1022 = vunpack.c.h.b16 %v397
        %v1023 = vunpack.c.l.b16 %v398
        %v1024 = vunpack.c.h.b16 %v398
        %v1025 = vunpack.c.l.b16 %v399
        %v1026 = vunpack.c.h.b16 %v399
        %v1027 = vunpack.c.l.b16 %v400
        %v1028 = vunpack.c.h.b16 %v400
        %v1029 = vunpack.c.l.b16 %v401
        %v1030 = vunpack.c.h.b16 %v401
        %v1031 = vunpack.c.l.b16 %v402
        %v1032 = vunpack.c.h.b16 %v402
        %v1033 = vunpack.c.l.b16 %v403
        %v1034 = vunpack.c.h.b16 %v403
        %v1035 = vunpack.c.l.b16 %v404
        %v1036 = vunpack.c.h.b16 %v404
        %v1037 = vunpack.c.l.b16 %v405
        %v1038 = vunpack.c.h.b16 %v405
        %v1039 = vunpack.c.l.b16 %v406
        %v1040 = vunpack.c.h.b16 %v406
        %v1041 = vunpack.c.l.b16 %v407
        %v1042 = vunpack.c.h.b16 %v407
        %v1043 = vunpack.c.l.b16 %v408
        %v1044 = vunpack.c.h.b16 %v408
        %v1045 = vunpack.c.l.b16 %v409
        %v1046 = vunpack.c.h.b16 %v409
        %v1047 = vunpack.c.l.b16 %v410
        %v1048 = vunpack.c.h.b16 %v410
        %v1049 = vunpack.c.l.b16 %v411
        %v1050 = vunpack.c.h.b16 %v411
        %v1051 = vunpack.c.l.b16 %v412
        %v1052 = vunpack.c.h.b16 %v412
        %v1053 = vunpack.c.l.b16 %v413
        %v1054 = vunpack.c.h.b16 %v413
        %v1055 = vunpack.c.l.b16 %v414
        %v1056 = vunpack.c.h.b16 %v414
        %v1057 = vunpack.c.l.b16 %v415
        %v1058 = vunpack.c.h.b16 %v415
        %v1059 = vunpack.c.l.b16 %v416
        %v1060 = vunpack.c.h.b16 %v416
        %v1061 = vunpack.c.l.b16 %v417
        %v1062 = vunpack.c.h.b16 %v417
        %v1063 = vunpack.c.l.b16 %v418
        %v1064 = vunpack.c.h.b16 %v418
        %v1065 = vunpack.c.l.b16 %v419
        %v1066 = vunpack.c.h.b16 %v419
        %v1067 = vunpack.c.l.b16 %v420
        %v1068 = vunpack.c.h.b16 %v420
        %v1069 = vunpack.c.l.b16 %v421
        %v1070 = vunpack.c.h.b16 %v421
        %v1071 = vunpack.c.l.b16 %v422
        %v1072 = vunpack.c.h.b16 %v422
        %v1073 = vunpack.c.l.b16 %v423
        %v1074 = vunpack.c.h.b16 %v423
        %v1075 = vunpack.c.l.b16 %v424
        %v1076 = vunpack.c.h.b16 %v424
        %v1077 = vunpack.c.l.b16 %v425
        %v1078 = vunpack.c.h.b16 %v425
        %v1079 = vunpack.c.l.b16 %v426
        %v1080 = vunpack.c.h.b16 %v426
        %v1081 = vunpack.c.l.b16 %v427
        %v1082 = vunpack.c.h.b16 %v427
        %v1083 = vunpack.c.l.b16 %v428
        %v1084 = vunpack.c.h.b16 %v428
        %v1085 = vunpack.c.l.b16 %v429
        %v1086 = vunpack.c.h.b16 %v429
        %v1087 = vunpack.c.l.b16 %v430
        %v1088 = vunpack.c.h.b16 %v430
        %v1089 = vunpack.c.l.b16 %v431
        %v1090 = vunpack.c.h.b16 %v431
        %v1091 = vunpack.c.l.b16 %v432
        %v1092 = vunpack.c.h.b16 %v432
        %v1093 = vunpack.c.l.b16 %v433
        %v1094 = vunpack.c.h.b16 %v433
        %v1095 = vunpack.c.l.b16 %v434
        %v1096 = vunpack.c.h.b16 %v434
        %v1097 = vunpack.c.l.b16 %v435
        %v1098 = vunpack.c.h.b16 %v435
        %v1099 = vunpack.c.l.b16 %v436
        %v1100 = vunpack.c.h.b16 %v436
        %v1101 = vunpack.c.l.b16 %v437
        %v1102 = vunpack.c.h.b16 %v437
        %v1103 = vunpack.c.l.b16 %v438
        %v1104 = vunpack.c.h.b16 %v438
        %v1105 = vunpack.c.l.b16 %v439
        %v1106 = vunpack.c.h.b16 %v439
        %v1107 = vunpack.c.l.b16 %v440
        %v1108 = vunpack.c.h.b16 %v440
        %v1109 = vunpack.c.l.b16 %v441
        %v1110 = vunpack.c.h.b16 %v441
        %v1111 = vunpack.c.l.b16 %v442
        %v1112 = vunpack.c.h.b16 %v442
        %v1113 = vunpack.c.l.b16 %v443
        %v1114 = vunpack.c.h.b16 %v443
        %v1115 = vunpack.c.l.b16 %v444
        %v1116 = vunpack.c.h.b16 %v444
        %v1117 = vunpack.c.l.b16 %v445
        %v1118 = vunpack.c.h.b16 %v445
        %v1119 = vunpack.c.l.b16 %v446
        %v1120 = vunpack.c.h.b16 %v446
        %v1121 = vunpack.c.l.b16 %v447
        %v1122 = vunpack.c.h.b16 %v447
        %v1123 = vunpack.c.l.b16 %v448
        %v1124 = vunpack.c.h.b16 %v448
        %v1125 = vunpack.c.l.b16 %v449
        %v1126 = vunpack.c.h.b16 %v449
        %v1127 = vunpack.c.l.b16 %v450
        %v1128 = vunpack.c.h.b16 %v450
        %v1129 = vunpack.c.l.b16 %v451
        %v1130 = vunpack.c.h.b16 %v451
        %v1131 = vunpack.c.l.b16 %v452
        %v1132 = vunpack.c.h.b16 %v452
        %v1133 = vunpack.c.l.b16 %v453
        %v1134 = vunpack.c.h.b16 %v453
        %v1135 = vunpack.c.l.b16 %v454
        %v1136 = vunpack.c.h.b16 %v454
        %v1137 = vunpack.c.l.b16 %v455
        %v1138 = vunpack.c.h.b16 %v455
        %v1139 = vunpack.c.l.b16 %v456
        %v1140 = vunpack.c.h.b16 %v456
        %v1141 = vunpack.c.l.b16 %v457
        %v1142 = vunpack.c.h.b16 %v457
        %v1143 = vunpack.c.l.b16 %v458
        %v1144 = vunpack.c.h.b16 %v458
        %v1145 = vunpack.c.l.b16 %v459
        %v1146 = vunpack.c.h.b16 %v459
        %v1147 = vunpack.c.l.b16 %v460
        %v1148 = vunpack.c.h.b16 %v460
        %v1149 = vunpack.c.l.b16 %v461
        %v1150 = vunpack.c.h.b16 %v461
        %v1151 = vunpack.c.l.b16 %v462
        %v1152 = vunpack.c.h.b16 %v462
        %v1153 = vunpack.c.l.b16 %v463
        %v1154 = vunpack.c.h.b16 %v463
        %v1155 = vunpack.c.l.b16 %v464
        %v1156 = vunpack.c.h.b16 %v464
        %v1157 = vunpack.c.l.b16 %v465
        %v1158 = vunpack.c.h.b16 %v465
        %v1159 = vunpack.c.l.b16 %v466
        %v1160 = vunpack.c.h.b16 %v466
        %v1161 = vunpack.c.l.b16 %v467
        %v1162 = vunpack.c.h.b16 %v467
        %v1163 = vunpack.c.l.b16 %v468
        %v1164 = vunpack.c.h.b16 %v468
        %v1165 = vunpack.c.l.b16 %v469
        %v1166 = vunpack.c.h.b16 %v469
        %v1167 = vunpack.c.l.b16 %v470
        %v1168 = vunpack.c.h.b16 %v470
        %v1169 = vunpack.c.l.b16 %v471
        %v1170 = vunpack.c.h.b16 %v471
        %v1171 = vunpack.c.l.b16 %v472
        %v1172 = vunpack.c.h.b16 %v472
        %v1173 = vunpack.c.l.b16 %v473
        %v1174 = vunpack.c.h.b16 %v473
        %v1175 = vunpack.c.l.b16 %v474
        %v1176 = vunpack.c.h.b16 %v474
        %v1177 = vunpack.c.l.b16 %v475
        %v1178 = vunpack.c.h.b16 %v475
        %v1179 = vunpack.c.l.b16 %v476
        %v1180 = vunpack.c.h.b16 %v476
        %v1181 = vunpack.c.l.b16 %v477
        %v1182 = vunpack.c.h.b16 %v477
        %v1183 = vunpack.c.l.b16 %v478
        %v1184 = vunpack.c.h.b16 %v478
        %v1185 = vunpack.c.l.b16 %v479
        %v1186 = vunpack.c.h.b16 %v479
        %v1187 = vunpack.c.l.b16 %v480
        %v1188 = vunpack.c.h.b16 %v480
        %v1189 = vunpack.c.l.b16 %v481
        %v1190 = vunpack.c.h.b16 %v481
        %v1191 = vunpack.c.l.b16 %v482
        %v1192 = vunpack.c.h.b16 %v482
        %v1193 = vunpack.c.l.b16 %v483
        %v1194 = vunpack.c.h.b16 %v483
        %v1195 = vunpack.c.l.b16 %v484
        %v1196 = vunpack.c.h.b16 %v484
        %v1197 = vunpack.c.l.b16 %v485
        %v1198 = vunpack.c.h.b16 %v485
        %v1199 = vunpack.c.l.b16 %v486
        %v1200 = vunpack.c.h.b16 %v486
        %v1201 = vunpack.c.l.b16 %v487
        %v1202 = vunpack.c.h.b16 %v487
        %v1203 = vunpack.c.l.b16 %v488
        %v1204 = vunpack.c.h.b16 %v488
        %v1205 = vunpack.c.l.b16 %v489
        %v1206 = vunpack.c.h.b16 %v489
        %v1207 = vunpack.c.l.b16 %v490
        %v1208 = vunpack.c.h.b16 %v490
        %v1209 = vunpack.c.l.b16 %v491
        %v1210 = vunpack.c.h.b16 %v491
        %v1211 = vunpack.c.l.b16 %v492
        %v1212 = vunpack.c.h.b16 %v492
        %v1213 = vunpack.c.l.b16 %v493
        %v1214 = vunpack.c.h.b16 %v493
        %v1215 = vunpack.c.l.b16 %v494
        %v1216 = vunpack.c.h.b16 %v494
        %v1217 = vunpack.c.l.b16 %v495
        %v1218 = vunpack.c.h.b16 %v495
        %v1219 = vunpack.c.l.b16 %v496
        %v1220 = vunpack.c.h.b16 %v496
        %v1221 = vunpack.c.l.b16 %v497
        %v1222 = vunpack.c.h.b16 %v497
        %v1223 = vunpack.c.l.b16 %v498
        %v1224 = vunpack.c.h.b16 %v498
        %v1225 = vunpack.c.l.b16 %v499
        %v1226 = vunpack.c.h.b16 %v499
        %v1227 = vunpack.c.l.b16 %v500
        %v1228 = vunpack.c.h.b16 %v500
        %v1229 = vunpack.c.l.b16 %v501
        %v1230 = vunpack.c.h.b16 %v501
        %v1231 = vunpack.c.l.b16 %v502
        %v1232 = vunpack.c.h.b16 %v502
        %v1233 = vunpack.c.l.b16 %v503
        %v1234 = vunpack.c.h.b16 %v503
        %v1235 = vunpack.c.l.b16 %v504
        %v1236 = vunpack.c.h.b16 %v504
        %v1237 = vunpack.c.l.b16 %v505
        %v1238 = vunpack.c.h.b16 %v505
        %v1239 = vunpack.c.l.b16 %v506
        %v1240 = vunpack.c.h.b16 %v506
        %v1241 = vunpack.c.l.b16 %v507
        %v1242 = vunpack.c.h.b16 %v507
        %v1243 = vunpack.c.l.b16 %v508
        %v1244 = vunpack.c.h.b16 %v508
        %v1245 = vunpack.c.l.b16 %v509
        %v1246 = vunpack.c.h.b16 %v509
        %v1247 = vunpack.c.l.b16 %v510
        %v1248 = vunpack.c.h.b16 %v510
        %v1249 = vunpack.c.l.b16 %v511
        %v1250 = vunpack.c.h.b16 %v511
        %v1251 = vunpack.c.l.b16 %v512
        %v1252 = vunpack.c.h.b16 %v512
        %v1253 = vunpack.c.l.b16 %v513
        %v1254 = vunpack.c.h.b16 %v513
        %v1255 = vunpack.c.l.b16 %v514
        %v1256 = vunpack.c.h.b16 %v514
        %v1257 = vunpack.c.l.b16 %v515
        %v1258 = vunpack.c.h.b16 %v515
        %v1259 = vunpack.c.l.b16 %v516
        %v1260 = vunpack.c.h.b16 %v516
        %v1261 = vunpack.c.l.b16 %v517
        %v1262 = vunpack.c.h.b16 %v517
        %v1263 = vunpack.c.l.b16 %v518
        %v1264 = vunpack.c.h.b16 %v518
        %v1265 = vunpack.c.l.b16 %v519
        %v1266 = vunpack.c.h.b16 %v519
        %v1267 = vunpack.c.l.b16 %v520
        %v1268 = vunpack.c.h.b16 %v520
        %v1269 = vunpack.c.l.b16 %v521
        %v1270 = vunpack.c.h.b16 %v521
        %v1271 = vunpack.c.l.b16 %v522
        %v1272 = vunpack.c.h.b16 %v522
        %v1273 = vunpack.c.l.b16 %v523
        %v1274 = vunpack.c.h.b16 %v523
        %v1275 = vunpack.c.l.b16 %v524
        %v1276 = vunpack.c.h.b16 %v524
        %v1277 = vunpack.c.l.b16 %v525
        %v1278 = vunpack.c.h.b16 %v525
        %v1279 = vunpack.c.l.b16 %v526
        %v1280 = vunpack.c.h.b16 %v526
        %v1281 = vunpack.c.l.b16 %v527
        %v1282 = vunpack.c.h.b16 %v527
        %v1283 = vunpack.c.l.b16 %v528
        %v1284 = vunpack.c.h.b16 %v528
        %v1285 = vunpack.c.l.b16 %v529
        %v1286 = vunpack.c.h.b16 %v529
        %v1287 = vunpack.c.l.b16 %v530
        %v1288 = vunpack.c.h.b16 %v530
        %v1289 = vunpack.c.l.b16 %v531
        %v1290 = vunpack.c.h.b16 %v531
        %v1291 = vunpack.c.l.b16 %v532
        %v1292 = vunpack.c.h.b16 %v532
        %v1293 = vunpack.c.l.b16 %v533
        %v1294 = vunpack.c.h.b16 %v533
        %v1295 = vunpack.c.l.b16 %v534
        %v1296 = vunpack.c.h.b16 %v534
        %v1297 = vunpack.c.l.b16 %v535
        %v1298 = vunpack.c.h.b16 %v535
        %v1299 = vunpack.c.l.b16 %v536
        %v1300 = vunpack.c.h.b16 %v536
        %v1301 = vunpack.c.l.b16 %v537
        %v1302 = vunpack.c.h.b16 %v537
        %v1303 = vunpack.c.l.b16 %v538
        %v1304 = vunpack.c.h.b16 %v538
        %v1305 = vunpack.c.l.b16 %v539
        %v1306 = vunpack.c.h.b16 %v539
        %v1307 = vunpack.c.l.b16 %v540
        %v1308 = vunpack.c.h.b16 %v540
        %v1309 = vunpack.c.l.b16 %v541
        %v1310 = vunpack.c.h.b16 %v541
        %v1311 = vunpack.c.l.b16 %v542
        %v1312 = vunpack.c.h.b16 %v542
        %v1313 = vunpack.c.l.b16 %v543
        %v1314 = vunpack.c.h.b16 %v543
        %v1315 = vunpack.c.l.b16 %v544
        %v1316 = vunpack.c.h.b16 %v544
        %v1317 = vunpack.c.l.b16 %v545
        %v1318 = vunpack.c.h.b16 %v545
        %v1319 = vunpack.c.l.b16 %v546
        %v1320 = vunpack.c.h.b16 %v546
        %v1321 = vunpack.c.l.b16 %v547
        %v1322 = vunpack.c.h.b16 %v547
        %v1323 = vunpack.c.l.b16 %v548
        %v1324 = vunpack.c.h.b16 %v548
        %v1325 = vunpack.c.l.b16 %v549
        %v1326 = vunpack.c.h.b16 %v549
        %v1327 = vunpack.c.l.b16 %v550
        %v1328 = vunpack.c.h.b16 %v550
        %v1329 = vunpack.c.l.b16 %v551
        %v1330 = vunpack.c.h.b16 %v551
        %v1331 = vunpack.c.l.b16 %v552
        %v1332 = vunpack.c.h.b16 %v552
        %v1333 = vunpack.c.l.b16 %v553
        %v1334 = vunpack.c.h.b16 %v553
        %v1335 = vunpack.c.l.b16 %v554
        %v1336 = vunpack.c.h.b16 %v554
        %v1337 = vunpack.c.l.b16 %v555
        %v1338 = vunpack.c.h.b16 %v555
        %v1339 = vunpack.c.l.b16 %v556
        %v1340 = vunpack.c.h.b16 %v556
        %v1341 = vunpack.c.l.b16 %v557
        %v1342 = vunpack.c.h.b16 %v557
        %v1343 = vunpack.c.l.b16 %v558
        %v1344 = vunpack.c.h.b16 %v558
        %v1345 = vunpack.c.l.b16 %v559
        %v1346 = vunpack.c.h.b16 %v559
        %v1347 = vunpack.c.l.b16 %v560
        %v1348 = vunpack.c.h.b16 %v560
        %v1349 = vunpack.c.l.b16 %v561
        %v1350 = vunpack.c.h.b16 %v561
        %v1351 = vunpack.c.l.b16 %v562
        %v1352 = vunpack.c.h.b16 %v562
        %v1353 = vunpack.c.l.b16 %v563
        %v1354 = vunpack.c.h.b16 %v563
        %v1355 = vunpack.c.l.b16 %v564
        %v1356 = vunpack.c.h.b16 %v564
        %v1357 = vunpack.c.l.b16 %v565
        %v1358 = vunpack.c.h.b16 %v565
        %v1359 = vunpack.c.l.b16 %v566
        %v1360 = vunpack.c.h.b16 %v566
        %v1361 = vunpack.c.l.b16 %v567
        %v1362 = vunpack.c.h.b16 %v567
        %v1363 = vunpack.c.l.b16 %v568
        %v1364 = vunpack.c.h.b16 %v568
        %v1365 = vunpack.c.l.b16 %v569
        %v1366 = vunpack.c.h.b16 %v569
        %v1367 = vunpack.c.l.b16 %v570
        %v1368 = vunpack.c.h.b16 %v570
        %v1369 = vunpack.c.l.b16 %v571
        %v1370 = vunpack.c.h.b16 %v571
        %v1371 = vunpack.c.l.b16 %v572
        %v1372 = vunpack.c.h.b16 %v572
        %v1373 = vunpack.c.l.b16 %v573
        %v1374 = vunpack.c.h.b16 %v573
        %v1375 = vunpack.c.l.b16 %v574
        %v1376 = vunpack.c.h.b16 %v574
        %v1377 = vunpack.c.l.b16 %v575
        %v1378 = vunpack.c.h.b16 %v575
        %v1379 = vunpack.c.l.b16 %v576
        %v1380 = vunpack.c.h.b16 %v576
        %v1381 = vunpack.c.l.b16 %v577
        %v1382 = vunpack.c.h.b16 %v577
        %v1383 = vunpack.c.l.b16 %v578
        %v1384 = vunpack.c.h.b16 %v578
        %v1385 = vunpack.c.l.b16 %v579
        %v1386 = vunpack.c.h.b16 %v579
        %v1387 = vunpack.c.l.b16 %v580
        %v1388 = vunpack.c.h.b16 %v580
        %v1389 = vunpack.c.l.b16 %v581
        %v1390 = vunpack.c.h.b16 %v581
        %v1391 = vunpack.c.l.b16 %v582
        %v1392 = vunpack.c.h.b16 %v582
        %v1393 = vunpack.c.l.b16 %v583
        %v1394 = vunpack.c.h.b16 %v583
        %v1395 = vunpack.c.l.b16 %v584
        %v1396 = vunpack.c.h.b16 %v584
        %v1397 = vunpack.c.l.b16 %v585
        %v1398 = vunpack.c.h.b16 %v585
        %v1399 = vunpack.c.l.b16 %v586
        %v1400 = vunpack.c.h.b16 %v586
        %v1401 = vunpack.c.l.b16 %v587
        %v1402 = vunpack.c.h.b16 %v587
        %v1403 = vunpack.c.l.b16 %v588
        %v1404 = vunpack.c.h.b16 %v588
        %v1405 = vunpack.c.l.b16 %v589
        %v1406 = vunpack.c.h.b16 %v589
        %v1407 = vunpack.c.l.b16 %v590
        %v1408 = vunpack.c.h.b16 %v590
        %v1409 = vunpack.c.l.b16 %v591
        %v1410 = vunpack.c.h.b16 %v591
        %v1411 = vunpack.c.l.b16 %v592
        %v1412 = vunpack.c.h.b16 %v592
        %v1413 = vunpack.c.l.b16 %v593
        %v1414 = vunpack.c.h.b16 %v593
        %v1415 = vunpack.c.l.b16 %v594
        %v1416 = vunpack.c.h.b16 %v594
        %v1417 = vunpack.c.l.b16 %v595
        %v1418 = vunpack.c.h.b16 %v595
        %v1419 = vunpack.c.l.b16 %v596
        %v1420 = vunpack.c.h.b16 %v596
        %v1421 = vunpack.c.l.b16 %v597
        %v1422 = vunpack.c.h.b16 %v597
        %v1423 = vunpack.c.l.b16 %v598
        %v1424 = vunpack.c.h.b16 %v598
        %v1425 = vunpack.c.l.b16 %v599
        %v1426 = vunpack.c.h.b16 %v599
        %v1427 = vunpack.c.l.b16 %v600
        %v1428 = vunpack.c.h.b16 %v600
        %v1429 = vunpack.c.l.b16 %v601
        %v1430 = vunpack.c.h.b16 %v601
        %v1431 = vunpack.c.l.b16 %v602
        %v1432 = vunpack.c.h.b16 %v602
        %v1433 = vunpack.c.l.b16 %v603
        %v1434 = vunpack.c.h.b16 %v603
        %v1435 = vunpack.c.l.b16 %v604
        %v1436 = vunpack.c.h.b16 %v604
        %v1437 = vunpack.c.l.b16 %v605
        %v1438 = vunpack.c.h.b16 %v605
        %v1439 = vunpack.c.l.b16 %v606
        %v1440 = vunpack.c.h.b16 %v606
        %v1441 = vunpack.c.l.b16 %v607
        %v1442 = vunpack.c.h.b16 %v607
        %v1443 = vunpack.c.l.b16 %v608
        %v1444 = vunpack.c.h.b16 %v608
        %v1445 = vunpack.c.l.b16 %v609
        %v1446 = vunpack.c.h.b16 %v609
        %v1447 = vunpack.c.l.b16 %v610
        %v1448 = vunpack.c.h.b16 %v610
        %v1449 = vunpack.c.l.b16 %v611
        %v1450 = vunpack.c.h.b16 %v611
        %v1451 = vunpack.c.l.b16 %v612
        %v1452 = vunpack.c.h.b16 %v612
        %v1453 = vunpack.c.l.b16 %v613
        %v1454 = vunpack.c.h.b16 %v613
        %v1455 = vunpack.c.l.b16 %v614
        %v1456 = vunpack.c.h.b16 %v614
        %v1457 = vunpack.c.l.b16 %v615
        %v1458 = vunpack.c.h.b16 %v615
        %v1459 = vunpack.c.l.b16 %v616
        %v1460 = vunpack.c.h.b16 %v616
        %v1461 = vunpack.c.l.b16 %v617
        %v1462 = vunpack.c.h.b16 %v617
        %v1463 = vunpack.c.l.b16 %v618
        %v1464 = vunpack.c.h.b16 %v618
        %v1465 = vunpack.c.l.b16 %v619
        %v1466 = vunpack.c.h.b16 %v619
        %v1467 = vunpack.c.l.b16 %v620
        %v1468 = vunpack.c.h.b16 %v620
        %v1469 = vunpack.c.l.b16 %v621
        %v1470 = vunpack.c.h.b16 %v621
        %v1471 = vunpack.c.l.b16 %v622
        %v1472 = vunpack.c.h.b16 %v622
        %v1473 = vunpack.c.l.b16 %v623
        %v1474 = vunpack.c.h.b16 %v623
        %v1475 = vunpack.c.l.b16 %v624
        %v1476 = vunpack.c.h.b16 %v624
        %v1477 = vunpack.c.l.b16 %v625
        %v1478 = vunpack.c.h.b16 %v625
        %v1479 = vunpack.c.l.b16 %v626
        %v1480 = vunpack.c.h.b16 %v626
        %v1481 = vunpack.c.l.b16 %v627
        %v1482 = vunpack.c.h.b16 %v627
        %v1483 = vunpack.c.l.b16 %v628
        %v1484 = vunpack.c.h.b16 %v628
        %v1485 = vunpack.c.l.b16 %v629
        %v1486 = vunpack.c.h.b16 %v629
        %v1487 = vunpack.c.l.b16 %v630
        %v1488 = vunpack.c.h.b16 %v630
        %v1489 = vunpack.c.l.b16 %v631
        %v1490 = vunpack.c.h.b16 %v631
        %v1491 = vunpack.c.l.b16 %v632
        %v1492 = vunpack.c.h.b16 %v632
        %v1493 = vunpack.c.l.b16 %v633
        %v1494 = vunpack.c.h.b16 %v633
        %v1495 = vunpack.c.l.b16 %v634
        %v1496 = vunpack.c.h.b16 %v634
        %v1497 = vunpack.c.l.b16 %v635
        %v1498 = vunpack.c.h.b16 %v635
        %v1499 = vunpack.c.l.b16 %v636
        %v1500 = vunpack.c.h.b16 %v636
        %v1501 = vunpack.c.l.b16 %v637
        %v1502 = vunpack.c.h.b16 %v637
        %v1503 = vunpack.c.l.b16 %v638
        %v1504 = vunpack.c.h.b16 %v638
        %v1505 = vunpack.c.l.b16 %v639
        %v1506 = vunpack.c.h.b16 %v639
        %v1507 = vunpack.c.l.b16 %v640
        %v1508 = vunpack.c.h.b16 %v640
        %v1509 = vunpack.c.l.b16 %v641
        %v1510 = vunpack.c.h.b16 %v641
        %v1511 = vunpack.c.l.b16 %v642
        %v1512 = vunpack.c.h.b16 %v642
        %v1513 = vunpack.c.l.b16 %v643
        %v1514 = vunpack.c.h.b16 %v643
        %v1515 = vunpack.c.l.b16 %v644
        %v1516 = vunpack.c.h.b16 %v644
        %v1517 = vunpack.c.l.b16 %v645
        %v1518 = vunpack.c.h.b16 %v645
        %v1519 = vunpack.c.l.b16 %v646
        %v1520 = vunpack.c.h.b16 %v646
        %v1521 = vunpack.c.l.b16 %v647
        %v1522 = vunpack.c.h.b16 %v647
        %v1523 = vunpack.c.l.b16 %v648
        %v1524 = vunpack.c.h.b16 %v648
        %v1525 = vunpack.c.l.b16 %v649
        %v1526 = vunpack.c.h.b16 %v649
        %v1527 = vunpack.c.l.b16 %v650
        %v1528 = vunpack.c.h.b16 %v650
        %v1529 = vunpack.c.l.b16 %v651
        %v1530 = vunpack.c.h.b16 %v651
        %v1531 = vunpack.c.l.b16 %v652
        %v1532 = vunpack.c.h.b16 %v652
        %v1533 = vunpack.c.l.b16 %v653
        %v1534 = vunpack.c.h.b16 %v653
        %v1535 = vunpack.c.l.b16 %v654
        %v1536 = vunpack.c.h.b16 %v654
        %v1537 = vunpack.c.l.b16 %v655
        %v1538 = vunpack.c.h.b16 %v655
        %v1539 = vunpack.c.l.b16 %v656
        %v1540 = vunpack.c.h.b16 %v656
        %v1541 = vunpack.c.l.b16 %v657
        %v1542 = vunpack.c.h.b16 %v657
        %v1543 = vunpack.c.l.b16 %v658
        %v1544 = vunpack.c.h.b16 %v658
        %v1545 = vunpack.c.l.b16 %v659
        %v1546 = vunpack.c.h.b16 %v659
        %v1547 = vunpack.c.l.b16 %v660
        %v1548 = vunpack.c.h.b16 %v660
        %v1549 = vunpack.c.l.b16 %v661
        %v1550 = vunpack.c.h.b16 %v661
        %v1551 = vunpack.c.l.b16 %v662
        %v1552 = vunpack.c.h.b16 %v662
        %v1553 = vunpack.c.l.b16 %v663
        %v1554 = vunpack.c.h.b16 %v663
        %v1555 = vunpack.c.l.b16 %v664
        %v1556 = vunpack.c.h.b16 %v664
        %v1557 = vunpack.c.l.b16 %v665
        %v1558 = vunpack.c.h.b16 %v665
        %v1559 = vunpack.c.l.b16 %v666
        %v1560 = vunpack.c.h.b16 %v666
        %v1561 = vunpack.c.l.b16 %v667
        %v1562 = vunpack.c.h.b16 %v667
        %v1563 = vunpack.c.l.b16 %v668
        %v1564 = vunpack.c.h.b16 %v668
        %v1565 = vpack.c.b16 %v995, %v989
        %v1566 = vpack.c.b16 %v996, %v990
        %v1567 = vpack.c.b16 %v997, %v991
        %v1568 = vpack.c.b16 %v998, %v992
        %v1569 = vpack.c.b16 %v999, %v993
        %v1570 = vpack.c.b16 %v1000, %v994
        %v1571 = vpack.c.b16 %v1007, %v1001
        %v1572 = vpack.c.b16 %v1008, %v1002
        %v1573 = vpack.c.b16 %v1009, %v1003
        %v1574 = vpack.c.b16 %v1010, %v1004
        %v1575 = vpack.c.b16 %v1011, %v1005
        %v1576 = vpack.c.b16 %v1012, %v1006
        %v1577 = vpack.c.b16 %v1019, %v1013
        %v1578 = vpack.c.b16 %v1020, %v1014
        %v1579 = vpack.c.b16 %v1021, %v1015
        %v1580 = vpack.c.b16 %v1022, %v1016
        %v1581 = vpack.c.b16 %v1023, %v1017
        %v1582 = vpack.c.b16 %v1024, %v1018
        %v1583 = vpack.c.b16 %v1031, %v1025
        %v1584 = vpack.c.b16 %v1032, %v1026
        %v1585 = vpack.c.b16 %v1033, %v1027
        %v1586 = vpack.c.b16 %v1034, %v1028
        %v1587 = vpack.c.b16 %v1035, %v1029
        %v1588 = vpack.c.b16 %v1036, %v1030
        %v1589 = vpack.c.b16 %v1043, %v1037
        %v1590 = vpack.c.b16 %v1044, %v1038
        %v1591 = vpack.c.b16 %v1045, %v1039
        %v1592 = vpack.c.b16 %v1046, %v1040
        %v1593 = vpack.c.b16 %v1047, %v1041
        %v1594 = vpack.c.b16 %v1048, %v1042
        %v1595 = vpack.c.b16 %v1055, %v1049
        %v1596 = vpack.c.b16 %v1056, %v1050
        %v1597 = vpack.c.b16 %v1057, %v1051
        %v1598 = vpack.c.b16 %v1058, %v1052
        %v1599 = vpack.c.b16 %v1059, %v1053
        %v1600 = vpack.c.b16 %v1060, %v1054
        %v1601 = vpack.c.b16 %v1067, %v1061
        %v1602 = vpack.c.b16 %v1068, %v1062
        %v1603 = vpack.c.b16 %v1069, %v1063
        %v1604 = vpack.c.b16 %v1070, %v1064
        %v1605 = vpack.c.b16 %v1071, %v1065
        %v1606 = vpack.c.b16 %v1072, %v1066
        %v1607 = vpack.c.b16 %v1079, %v1073
        %v1608 = vpack.c.b16 %v1080, %v1074
        %v1609 = vpack.c.b16 %v1081, %v1075
        %v1610 = vpack.c.b16 %v1082, %v1076
        %v1611 = vpack.c.b16 %v1083, %v1077
        %v1612 = vpack.c.b16 %v1084, %v1078
        %v1613 = vpack.c.b16 %v1091, %v1085
        %v1614 = vpack.c.b16 %v1092, %v1086
        %v1615 = vpack.c.b16 %v1093, %v1087
        %v1616 = vpack.c.b16 %v1094, %v1088
        %v1617 = vpack.c.b16 %v1095, %v1089
        %v1618 = vpack.c.b16 %v1096, %v1090
        %v1619 = vpack.c.b16 %v1103, %v1097
        %v1620 = vpack.c.b16 %v1104, %v1098
        %v1621 = vpack.c.b16 %v1105, %v1099
        %v1622 = vpack.c.b16 %v1106, %v1100
        %v1623 = vpack.c.b16 %v1107, %v1101
        %v1624 = vpack.c.b16 %v1108, %v1102
        %v1625 = vpack.c.b16 %v1115, %v1109
        %v1626 = vpack.c.b16 %v1116, %v1110
        %v1627 = vpack.c.b16 %v1117, %v1111
        %v1628 = vpack.c.b16 %v1118, %v1112
        %v1629 = vpack.c.b16 %v1119, %v1113
        %v1630 = vpack.c.b16 %v1120, %v1114
        %v1631 = vpack.c.b16 %v1127, %v1121
        %v1632 = vpack.c.b16 %v1128, %v1122
        %v1633 = vpack.c.b16 %v1129, %v1123
        %v1634 = vpack.c.b16 %v1130, %v1124
        %v1635 = vpack.c.b16 %v1131, %v1125
        %v1636 = vpack.c.b16 %v1132, %v1126
        %v1637 = vpack.c.b16 %v1139, %v1133
        %v1638 = vpack.c.b16 %v1140, %v1134
        %v1639 = vpack.c.b16 %v1141, %v1135
        %v1640 = vpack.c.b16 %v1142, %v1136
        %v1641 = vpack.c.b16 %v1143, %v1137
        %v1642 = vpack.c.b16 %v1144, %v1138
        %v1643 = vpack.c.b16 %v1151, %v1145
        %v1644 = vpack.c.b16 %v1152, %v1146
        %v1645 = vpack.c.b16 %v1153, %v1147
        %v1646 = vpack.c.b16 %v1154, %v1148
        %v1647 = vpack.c.b16 %v1155, %v1149
        %v1648 = vpack.c.b16 %v1156, %v1150
        %v1649 = vpack.c.b16 %v1163, %v1157
        %v1650 = vpack.c.b16 %v1164, %v1158
        %v1651 = vpack.c.b16 %v1165, %v1159
        %v1652 = vpack.c.b16 %v1166, %v1160
        %v1653 = vpack.c.b16 %v1167, %v1161
        %v1654 = vpack.c.b16 %v1168, %v1162
        %v1655 = vpack.c.b16 %v1175, %v1169
        %v1656 = vpack.c.b16 %v1176, %v1170
        %v1657 = vpack.c.b16 %v1177, %v1171
        %v1658 = vpack.c.b16 %v1178, %v1172
        %v1659 = vpack.c.b16 %v1179, %v1173
        %v1660 = vpack.c.b16 %v1180, %v1174
        %v1661 = vpack.c.b16 %v1187, %v1181
        %v1662 = vpack.c.b16 %v1188, %v1182
        %v1663 = vpack.c.b16 %v1189, %v1183
        %v1664 = vpack.c.b16 %v1190, %v1184
        %v1665 = vpack.c.b16 %v1191, %v1185
        %v1666 = vpack.c.b16 %v1192, %v1186
        %v1667 = vpack.c.b16 %v1199, %v1193
        %v1668 = vpack.c.b16 %v1200, %v1194
        %v1669 = vpack.c.b16 %v1201, %v1195
        %v1670 = vpack.c.b16 %v1202, %v1196
        %v1671 = vpack.c.b16 %v1203, %v1197
        %v1672 = vpack.c.b16 %v1204, %v1198
        %v1673 = vpack.c.b16 %v1211, %v1205
        %v1674 = vpack.c.b16 %v1212, %v1206
        %v1675 = vpack.c.b16 %v1213, %v1207
        %v1676 = vpack.c.b16 %v1214, %v1208
        %v1677 = vpack.c.b16 %v1215, %v1209
        %v1678 = vpack.c.b16 %v1216, %v1210
        %v1679 = vpack.c.b16 %v1223, %v1217
        %v1680 = vpack.c.b16 %v1224, %v1218
        %v1681 = vpack.c.b16 %v1225, %v1219
        %v1682 = vpack.c.b16 %v1226, %v1220
        %v1683 = vpack.c.b16 %v1227, %v1221
        %v1684 = vpack.c.b16 %v1228, %v1222
        %v1685 = vpack.c.b16 %v1235, %v1229
        %v1686 = vpack.c.b16 %v1236, %v1230
        %v1687 = vpack.c.b16 %v1237, %v1231
        %v1688 = vpack.c.b16 %v1238, %v1232
        %v1689 = vpack.c.b16 %v1239, %v1233
        %v1690 = vpack.c.b16 %v1240, %v1234
        %v1691 = vpack.c.b16 %v1247, %v1241
        %v1692 = vpack.c.b16 %v1248, %v1242
        %v1693 = vpack.c.b16 %v1249, %v1243
        %v1694 = vpack.c.b16 %v1250, %v1244
        %v1695 = vpack.c.b16 %v1251, %v1245
        %v1696 = vpack.c.b16 %v1252, %v1246
        %v1697 = vpack.c.b16 %v1259, %v1253
        %v1698 = vpack.c.b16 %v1260, %v1254
        %v1699 = vpack.c.b16 %v1261, %v1255
        %v1700 = vpack.c.b16 %v1262, %v1256
        %v1701 = vpack.c.b16 %v1263, %v1257
        %v1702 = vpack.c.b16 %v1264, %v1258
        %v1703 = vpack.c.b16 %v1271, %v1265
        %v1704 = vpack.c.b16 %v1272, %v1266
        %v1705 = vpack.c.b16 %v1273, %v1267
        %v1706 = vpack.c.b16 %v1274, %v1268
        %v1707 = vpack.c.b16 %v1275, %v1269
        %v1708 = vpack.c.b16 %v1276, %v1270
        %v1709 = vpack.c.b16 %v1283, %v1277
        %v1710 = vpack.c.b16 %v1284, %v1278
        %v1711 = vpack.c.b16 %v1285, %v1279
        %v1712 = vpack.c.b16 %v1286, %v1280
        %v1713 = vpack.c.b16 %v1287, %v1281
        %v1714 = vpack.c.b16 %v1288, %v1282
        %v1715 = vpack.c.b16 %v1295, %v1289
        %v1716 = vpack.c.b16 %v1296, %v1290
        %v1717 = vpack.c.b16 %v1297, %v1291
        %v1718 = vpack.c.b16 %v1298, %v1292
        %v1719 = vpack.c.b16 %v1299, %v1293
        %v1720 = vpack.c.b16 %v1300, %v1294
        %v1721 = vpack.c.b16 %v1307, %v1301
        %v1722 = vpack.c.b16 %v1308, %v1302
        %v1723 = vpack.c.b16 %v1309, %v1303
        %v1724 = vpack.c.b16 %v1310, %v1304
        %v1725 = vpack.c.b16 %v1311, %v1305
        %v1726 = vpack.c.b16 %v1312, %v1306
        %v1727 = vpack.c.b16 %v1319, %v1313
        %v1728 = vpack.c.b16 %v1320, %v1314
        %v1729 = vpack.c.b16 %v1321, %v1315
        %v1730 = vpack.c.b16 %v1322, %v1316
        %v1731 = vpack.c.b16 %v1323, %v1317
        %v1732 = vpack.c.b16 %v1324, %v1318
        %v1733 = vpack.c.b16 %v1331, %v1325
        %v1734 = vpack.c.b16 %v1332, %v1326
        %v1735 = vpack.c.b16 %v1333, %v1327
        %v1736 = vpack.c.b16 %v1334, %v1328
        %v1737 = vpack.c.b16 %v1335, %v1329
        %v1738 = vpack.c.b16 %v1336, %v1330
        %v1739 = vpack.c.b16 %v1343, %v1337
        %v1740 = vpack.c.b16 %v1344, %v1338
        %v1741 = vpack.c.b16 %v1345, %v1339
        %v1742 = vpack.c.b16 %v1346, %v1340
        %v1743 = vpack.c.b16 %v1347, %v1341
        %v1744 = vpack.c.b16 %v1348, %v1342
        %v1745 = vpack.c.b16 %v1355, %v1349
        %v1746 = vpack.c.b16 %v1356, %v1350
        %v1747 = vpack.c.b16 %v1357, %v1351
        %v1748 = vpack.c.b16 %v1358, %v1352
        %v1749 = vpack.c.b16 %v1359, %v1353
        %v1750 = vpack.c.b16 %v1360, %v1354
        %v1751 = vpack.c.b16 %v1367, %v1361
        %v1752 = vpack.c.b16 %v1368, %v1362
        %v1753 = vpack.c.b16 %v1369, %v1363
        %v1754 = vpack.c.b16 %v1370, %v1364
        %v1755 = vpack.c.b16 %v1371, %v1365
        %v1756 = vpack.c.b16 %v1372, %v1366
        %v1757 = vpack.c.b16 %v1379, %v1373
        %v1758 = vpack.c.b16 %v1380, %v1374
        %v1759 = vpack.c.b16 %v1381, %v1375
        %v1760 = vpack.c.b16 %v1382, %v1376
        %v1761 = vpack.c.b16 %v1383, %v1377
        %v1762 = vpack.c.b16 %v1384, %v1378
        %v1763 = vpack.c.b16 %v1391, %v1385
        %v1764 = vpack.c.b16 %v1392, %v1386
        %v1765 = vpack.c.b16 %v1393, %v1387
        %v1766 = vpack.c.b16 %v1394, %v1388
        %v1767 = vpack.c.b16 %v1395, %v1389
        %v1768 = vpack.c.b16 %v1396, %v1390
        %v1769 = vpack.c.b16 %v1403, %v1397
        %v1770 = vpack.c.b16 %v1404, %v1398
        %v1771 = vpack.c.b16 %v1405, %v1399
        %v1772 = vpack.c.b16 %v1406, %v1400
        %v1773 = vpack.c.b16 %v1407, %v1401
        %v1774 = vpack.c.b16 %v1408, %v1402
        %v1775 = vpack.c.b16 %v1415, %v1409
        %v1776 = vpack.c.b16 %v1416, %v1410
        %v1777 = vpack.c.b16 %v1417, %v1411
        %v1778 = vpack.c.b16 %v1418, %v1412
        %v1779 = vpack.c.b16 %v1419, %v1413
        %v1780 = vpack.c.b16 %v1420, %v1414
        %v1781 = vpack.c.b16 %v1427, %v1421
        %v1782 = vpack.c.b16 %v1428, %v1422
        %v1783 = vpack.c.b16 %v1429, %v1423
        %v1784 = vpack.c.b16 %v1430, %v1424
        %v1785 = vpack.c.b16 %v1431, %v1425
        %v1786 = vpack.c.b16 %v1432, %v1426
        %v1787 = vpack.c.b16 %v1439, %v1433
        %v1788 = vpack.c.b16 %v1440, %v1434
        %v1789 = vpack.c.b16 %v1441, %v1435
        %v1790 = vpack.c.b16 %v1442, %v1436
        %v1791 = vpack.c.b16 %v1443, %v1437
        %v1792 = vpack.c.b16 %v1444, %v1438
        %v1793 = vpack.c.b16 %v1451, %v1445
        %v1794 = vpack.c.b16 %v1452, %v1446
        %v1795 = vpack.c.b16 %v1453, %v1447
        %v1796 = vpack.c.b16 %v1454, %v1448
        %v1797 = vpack.c.b16 %v1455, %v1449
        %v1798 = vpack.c.b16 %v1456, %v1450
        %v1799 = vpack.c.b16 %v1463, %v1457
        %v1800 = vpack.c.b16 %v1464, %v1458
        %v1801 = vpack.c.b16 %v1465, %v1459
        %v1802 = vpack.c.b16 %v1466, %v1460
        %v1803 = vpack.c.b16 %v1467, %v1461
        %v1804 = vpack.c.b16 %v1468, %v1462
        %v1805 = vpack.c.b16 %v1475, %v1469
        %v1806 = vpack.c.b16 %v1476, %v1470
        %v1807 = vpack.c.b16 %v1477, %v1471
        %v1808 = vpack.c.b16 %v1478, %v1472
        %v1809 = vpack.c.b16 %v1479, %v1473
        %v1810 = vpack.c.b16 %v1480, %v1474
        %v1811 = vpack.c.b16 %v1487, %v1481
        %v1812 = vpack.c.b16 %v1488, %v1482
        %v1813 = vpack.c.b16 %v1489, %v1483
        %v1814 = vpack.c.b16 %v1490, %v1484
        %v1815 = vpack.c.b16 %v1491, %v1485
        %v1816 = vpack.c.b16 %v1492, %v1486
        %v1817 = vpack.c.b16 %v1499, %v1493
        %v1818 = vpack.c.b16 %v1500, %v1494
        %v1819 = vpack.c.b16 %v1501, %v1495
        %v1820 = vpack.c.b16 %v1502, %v1496
        %v1821 = vpack.c.b16 %v1503, %v1497
        %v1822 = vpack.c.b16 %v1504, %v1498
        %v1823 = vpack.c.b16 %v1511, %v1505
        %v1824 = vpack.c.b16 %v1512, %v1506
        %v1825 = vpack.c.b16 %v1513, %v1507
        %v1826 = vpack.c.b16 %v1514, %v1508
        %v1827 = vpack.c.b16 %v1515, %v1509
        %v1828 = vpack.c.b16 %v1516, %v1510
        %v1829 = vpack.c.b16 %v1523, %v1517
        %v1830 = vpack.c.b16 %v1524, %v1518
        %v1831 = vpack.c.b16 %v1525, %v1519
        %v1832 = vpack.c.b16 %v1526, %v1520
        %v1833 = vpack.c.b16 %v1527, %v1521
        %v1834 = vpack.c.b16 %v1528, %v1522
        %v1835 = vpack.c.b16 %v1535, %v1529
        %v1836 = vpack.c.b16 %v1536, %v1530
        %v1837 = vpack.c.b16 %v1537, %v1531
        %v1838 = vpack.c.b16 %v1538, %v1532
        %v1839 = vpack.c.b16 %v1539, %v1533
        %v1840 = vpack.c.b16 %v1540, %v1534
        %v1841 = vpack.c.b16 %v1547, %v1541
        %v1842 = vpack.c.b16 %v1548, %v1542
        %v1843 = vpack.c.b16 %v1549, %v1543
        %v1844 = vpack.c.b16 %v1550, %v1544
        %v1845 = vpack.c.b16 %v1551, %v1545
        %v1846 = vpack.c.b16 %v1552, %v1546
        %v1847 = vpack.c.b16 %v1559, %v1553
        %v1848 = vpack.c.b16 %v1560, %v1554
        %v1849 = vpack.c.b16 %v1561, %v1555
        %v1850 = vpack.c.b16 %v1562, %v1556
        %v1851 = vpack.c.b16 %v1563, %v1557
        %v1852 = vpack.c.b16 %v1564, %v1558
        %2141 = vmatprep.subr.bf16.mxu0 %v1608
        %2142 = vmatpush1.bf16.msra.mxu0 %v1607
        %2143 = vmatprep.subr.bf16.mxu0 %v1602
        %2144 = vmatpush1.bf16.msra.mxu0 %v1601
        %2145 = vmatprep.subr.bf16.mxu0 %v1596
        %2146 = vmatpush1.bf16.msra.mxu0 %v1595
        %2147 = vmatprep.subr.bf16.mxu0 %v1590
        %2148 = vmatpush1.bf16.msra.mxu0 %v1589
        %2149 = vmatprep.subr.bf16.mxu0 %v1584
        %2150 = vmatpush1.bf16.msra.mxu0 %v1583
        %2151 = vmatprep.subr.bf16.mxu0 %v1578
        %2152 = vmatpush1.bf16.msra.mxu0 %v1577
        %2153 = vmatprep.subr.bf16.mxu0 %v1572
        %2154 = vmatpush1.bf16.msra.mxu0 %v1571
        %2155 = vmatprep.subr.bf16.mxu0 %v1566
        %2156 = vmatpush1.bf16.msra.mxu0 %v1565
        %2157 = vmatprep.subr.bf16.mxu0 %v1656
        %2158 = vmatpush2.bf16.msra.mxu0 %v1655
        %2159 = vmatprep.subr.bf16.mxu0 %v1650
        %2160 = vmatpush2.bf16.msra.mxu0 %v1649
        %2161 = vmatprep.subr.bf16.mxu0 %v1644
        %2162 = vmatpush2.bf16.msra.mxu0 %v1643
        %2163 = vmatprep.subr.bf16.mxu0 %v1638
        %2164 = vmatpush2.bf16.msra.mxu0 %v1637
        %2165 = vmatprep.subr.bf16.mxu0 %v1632
        %2166 = vmatpush2.bf16.msra.mxu0 %v1631
        %2167 = vmatprep.subr.bf16.mxu0 %v1626
        %2168 = vmatpush2.bf16.msra.mxu0 %v1625
        %2169 = vmatprep.subr.bf16.mxu0 %v1620
        %2170 = vmatpush2.bf16.msra.mxu0 %v1619
        %2171 = vmatprep.subr.bf16.mxu0 %v1614
        %2172 = vmatpush2.bf16.msra.mxu0 %v1613
        %2173 = vmatprep.mubr.bf16.mxu0 %v346
        %2174 = vmatmul.mubr.bf16.gmra.mxu0 %v345
        %v2175 = vpop.f32.mrf.mxu0
        %v2176 = vadd.f32 %v674, %v2175
        %v2177 = vpop.f32.mrf.mxu0
        %v2178 = vadd.f32 %v678, %v2177
        %v2179 = vpop.f32.mrf.mxu0
        %v2180 = vadd.f32 %v674, %v2179
        %v2181 = vpop.f32.mrf.mxu0
        %v2182 = vadd.f32 %v678, %v2181
        %2183 = vmatprep.mubr.bf16.mxu0 %v352
        %2184 = vmatmul.mubr.bf16.gmra.mxu0 %v351
        %v2185 = vpop.f32.mrf.mxu0
        %v2186 = vadd.f32 %v674, %v2185
        %v2187 = vpop.f32.mrf.mxu0
        %v2188 = vadd.f32 %v678, %v2187
        %v2189 = vpop.f32.mrf.mxu0
        %v2190 = vadd.f32 %v674, %v2189
        %v2191 = vpop.f32.mrf.mxu0
        %v2192 = vadd.f32 %v678, %v2191
        %2193 = vmatprep.mubr.bf16.mxu0 %v358
        %2194 = vmatmul.mubr.bf16.gmra.mxu0 %v357
        %v2195 = vpop.f32.mrf.mxu0
        %v2196 = vadd.f32 %v674, %v2195
        %v2197 = vpop.f32.mrf.mxu0
        %v2198 = vadd.f32 %v678, %v2197
        %v2199 = vpop.f32.mrf.mxu0
        %v2200 = vadd.f32 %v674, %v2199
        %v2201 = vpop.f32.mrf.mxu0
        %v2202 = vadd.f32 %v678, %v2201
        %2203 = vmatprep.mubr.bf16.mxu0 %v364
        %2204 = vmatmul.mubr.bf16.gmra.mxu0 %v363
        %v2205 = vpop.f32.mrf.mxu0
        %v2206 = vadd.f32 %v674, %v2205
        %v2207 = vpop.f32.mrf.mxu0
        %v2208 = vadd.f32 %v678, %v2207
        %v2209 = vpop.f32.mrf.mxu0
        %v2210 = vadd.f32 %v674, %v2209
        %v2211 = vpop.f32.mrf.mxu0
        %v2212 = vadd.f32 %v678, %v2211
        %2213 = vmatprep.mubr.bf16.mxu0 %v370
        %2214 = vmatmul.mubr.bf16.gmra.mxu0 %v369
        %v2215 = vpop.f32.mrf.mxu0
        %v2216 = vadd.f32 %v674, %v2215
        %v2217 = vpop.f32.mrf.mxu0
        %v2218 = vadd.f32 %v678, %v2217
        %v2219 = vpop.f32.mrf.mxu0
        %v2220 = vadd.f32 %v674, %v2219
        %v2221 = vpop.f32.mrf.mxu0
        %v2222 = vadd.f32 %v678, %v2221
        %2223 = vmatprep.mubr.bf16.mxu0 %v376
        %2224 = vmatmul.mubr.bf16.gmra.mxu0 %v375
        %v2225 = vpop.f32.mrf.mxu0
        %v2226 = vadd.f32 %v674, %v2225
        %v2227 = vpop.f32.mrf.mxu0
        %v2228 = vadd.f32 %v678, %v2227
        %v2229 = vpop.f32.mrf.mxu0
        %v2230 = vadd.f32 %v674, %v2229
        %v2231 = vpop.f32.mrf.mxu0
        %v2232 = vadd.f32 %v678, %v2231
        %2233 = vdwg.mxu0
        %2234 = vmatprep.subr.bf16.mxu0 %v1704
        %2235 = vmatpush1.bf16.msra.mxu0 %v1703
        %2236 = vmatprep.subr.bf16.mxu0 %v1698
        %2237 = vmatpush1.bf16.msra.mxu0 %v1697
        %2238 = vmatprep.subr.bf16.mxu0 %v1692
        %2239 = vmatpush1.bf16.msra.mxu0 %v1691
        %2240 = vmatprep.subr.bf16.mxu0 %v1686
        %2241 = vmatpush1.bf16.msra.mxu0 %v1685
        %2242 = vmatprep.subr.bf16.mxu0 %v1680
        %2243 = vmatpush1.bf16.msra.mxu0 %v1679
        %2244 = vmatprep.subr.bf16.mxu0 %v1674
        %2245 = vmatpush1.bf16.msra.mxu0 %v1673
        %2246 = vmatprep.subr.bf16.mxu0 %v1668
        %2247 = vmatpush1.bf16.msra.mxu0 %v1667
        %2248 = vmatprep.subr.bf16.mxu0 %v1662
        %2249 = vmatpush1.bf16.msra.mxu0 %v1661
        %2250 = vmatprep.subr.bf16.mxu0 %v1752
        %2251 = vmatpush2.bf16.msra.mxu0 %v1751
        %2252 = vmatprep.subr.bf16.mxu0 %v1746
        %2253 = vmatpush2.bf16.msra.mxu0 %v1745
        %2254 = vmatprep.subr.bf16.mxu0 %v1740
        %2255 = vmatpush2.bf16.msra.mxu0 %v1739
        %2256 = vmatprep.subr.bf16.mxu0 %v1734
        %2257 = vmatpush2.bf16.msra.mxu0 %v1733
        %2258 = vmatprep.subr.bf16.mxu0 %v1728
        %2259 = vmatpush2.bf16.msra.mxu0 %v1727
        %2260 = vmatprep.subr.bf16.mxu0 %v1722
        %2261 = vmatpush2.bf16.msra.mxu0 %v1721
        %2262 = vmatprep.subr.bf16.mxu0 %v1716
        %2263 = vmatpush2.bf16.msra.mxu0 %v1715
        %2264 = vmatprep.subr.bf16.mxu0 %v1710
        %2265 = vmatpush2.bf16.msra.mxu0 %v1709
        %2266 = vmatprep.mubr.bf16.mxu0 %v348
        %2267 = vmatmul.mubr.bf16.gmra.mxu0 %v347
        %v2268 = vpop.f32.mrf.mxu0
        %v2269 = vadd.f32 %v2176, %v2268
        %v2270 = vpop.f32.mrf.mxu0
        %v2271 = vadd.f32 %v2178, %v2270
        %v2272 = vpop.f32.mrf.mxu0
        %v2273 = vadd.f32 %v2180, %v2272
        %v2274 = vpop.f32.mrf.mxu0
        %v2275 = vadd.f32 %v2182, %v2274
        %2276 = vmatprep.mubr.bf16.mxu0 %v354
        %2277 = vmatmul.mubr.bf16.gmra.mxu0 %v353
        %v2278 = vpop.f32.mrf.mxu0
        %v2279 = vadd.f32 %v2186, %v2278
        %v2280 = vpop.f32.mrf.mxu0
        %v2281 = vadd.f32 %v2188, %v2280
        %v2282 = vpop.f32.mrf.mxu0
        %v2283 = vadd.f32 %v2190, %v2282
        %v2284 = vpop.f32.mrf.mxu0
        %v2285 = vadd.f32 %v2192, %v2284
        %2286 = vmatprep.mubr.bf16.mxu0 %v360
        %2287 = vmatmul.mubr.bf16.gmra.mxu0 %v359
        %v2288 = vpop.f32.mrf.mxu0
        %v2289 = vadd.f32 %v2196, %v2288
        %v2290 = vpop.f32.mrf.mxu0
        %v2291 = vadd.f32 %v2198, %v2290
        %v2292 = vpop.f32.mrf.mxu0
        %v2293 = vadd.f32 %v2200, %v2292
        %v2294 = vpop.f32.mrf.mxu0
        %v2295 = vadd.f32 %v2202, %v2294
        %2296 = vmatprep.mubr.bf16.mxu0 %v366
        %2297 = vmatmul.mubr.bf16.gmra.mxu0 %v365
        %v2298 = vpop.f32.mrf.mxu0
        %v2299 = vadd.f32 %v2206, %v2298
        %v2300 = vpop.f32.mrf.mxu0
        %v2301 = vadd.f32 %v2208, %v2300
        %v2302 = vpop.f32.mrf.mxu0
        %v2303 = vadd.f32 %v2210, %v2302
        %v2304 = vpop.f32.mrf.mxu0
        %v2305 = vadd.f32 %v2212, %v2304
        %2306 = vmatprep.mubr.bf16.mxu0 %v372
        %2307 = vmatmul.mubr.bf16.gmra.mxu0 %v371
        %v2308 = vpop.f32.mrf.mxu0
        %v2309 = vadd.f32 %v2216, %v2308
        %v2310 = vpop.f32.mrf.mxu0
        %v2311 = vadd.f32 %v2218, %v2310
        %v2312 = vpop.f32.mrf.mxu0
        %v2313 = vadd.f32 %v2220, %v2312
        %v2314 = vpop.f32.mrf.mxu0
        %v2315 = vadd.f32 %v2222, %v2314
        %2316 = vmatprep.mubr.bf16.mxu0 %v378
        %2317 = vmatmul.mubr.bf16.gmra.mxu0 %v377
        %v2318 = vpop.f32.mrf.mxu0
        %v2319 = vadd.f32 %v2226, %v2318
        %v2320 = vpop.f32.mrf.mxu0
        %v2321 = vadd.f32 %v2228, %v2320
        %v2322 = vpop.f32.mrf.mxu0
        %v2323 = vadd.f32 %v2230, %v2322
        %v2324 = vpop.f32.mrf.mxu0
        %v2325 = vadd.f32 %v2232, %v2324
        %2326 = vdwg.mxu0
        %2327 = vmatprep.subr.bf16.mxu0 %v1800
        %2328 = vmatpush1.bf16.msra.mxu0 %v1799
        %2329 = vmatprep.subr.bf16.mxu0 %v1794
        %2330 = vmatpush1.bf16.msra.mxu0 %v1793
        %2331 = vmatprep.subr.bf16.mxu0 %v1788
        %2332 = vmatpush1.bf16.msra.mxu0 %v1787
        %2333 = vmatprep.subr.bf16.mxu0 %v1782
        %2334 = vmatpush1.bf16.msra.mxu0 %v1781
        %2335 = vmatprep.subr.bf16.mxu0 %v1776
        %2336 = vmatpush1.bf16.msra.mxu0 %v1775
        %2337 = vmatprep.subr.bf16.mxu0 %v1770
        %2338 = vmatpush1.bf16.msra.mxu0 %v1769
        %2339 = vmatprep.subr.bf16.mxu0 %v1764
        %2340 = vmatpush1.bf16.msra.mxu0 %v1763
        %2341 = vmatprep.subr.bf16.mxu0 %v1758
        %2342 = vmatpush1.bf16.msra.mxu0 %v1757
        %2343 = vmatprep.subr.bf16.mxu0 %v1848
        %2344 = vmatpush2.bf16.msra.mxu0 %v1847
        %2345 = vmatprep.subr.bf16.mxu0 %v1842
        %2346 = vmatpush2.bf16.msra.mxu0 %v1841
        %2347 = vmatprep.subr.bf16.mxu0 %v1836
        %2348 = vmatpush2.bf16.msra.mxu0 %v1835
        %2349 = vmatprep.subr.bf16.mxu0 %v1830
        %2350 = vmatpush2.bf16.msra.mxu0 %v1829
        %2351 = vmatprep.subr.bf16.mxu0 %v1824
        %2352 = vmatpush2.bf16.msra.mxu0 %v1823
        %2353 = vmatprep.subr.bf16.mxu0 %v1818
        %2354 = vmatpush2.bf16.msra.mxu0 %v1817
        %2355 = vmatprep.subr.bf16.mxu0 %v1812
        %2356 = vmatpush2.bf16.msra.mxu0 %v1811
        %2357 = vmatprep.subr.bf16.mxu0 %v1806
        %2358 = vmatpush2.bf16.msra.mxu0 %v1805
        %2359 = vmatprep.mubr.bf16.mxu0 %v350
        %2360 = vmatmul.mubr.bf16.gmra.mxu0 %v349
        %v2361 = vpop.f32.mrf.mxu0
        %v2362 = vadd.f32 %v2269, %v2361
        %v2363 = vpop.f32.mrf.mxu0
        %v2364 = vadd.f32 %v2271, %v2363
        %v2365 = vpop.f32.mrf.mxu0
        %v2366 = vadd.f32 %v2273, %v2365
        %v2367 = vpop.f32.mrf.mxu0
        %v2368 = vadd.f32 %v2275, %v2367
        %2369 = vmatprep.mubr.bf16.mxu0 %v356
        %2370 = vmatmul.mubr.bf16.gmra.mxu0 %v355
        %v2371 = vpop.f32.mrf.mxu0
        %v2372 = vadd.f32 %v2279, %v2371
        %v2373 = vpop.f32.mrf.mxu0
        %v2374 = vadd.f32 %v2281, %v2373
        %v2375 = vpop.f32.mrf.mxu0
        %v2376 = vadd.f32 %v2283, %v2375
        %v2377 = vpop.f32.mrf.mxu0
        %v2378 = vadd.f32 %v2285, %v2377
        %2379 = vmatprep.mubr.bf16.mxu0 %v362
        %2380 = vmatmul.mubr.bf16.gmra.mxu0 %v361
        %v2381 = vpop.f32.mrf.mxu0
        %v2382 = vadd.f32 %v2289, %v2381
        %v2383 = vpop.f32.mrf.mxu0
        %v2384 = vadd.f32 %v2291, %v2383
        %v2385 = vpop.f32.mrf.mxu0
        %v2386 = vadd.f32 %v2293, %v2385
        %v2387 = vpop.f32.mrf.mxu0
        %v2388 = vadd.f32 %v2295, %v2387
        %2389 = vmatprep.mubr.bf16.mxu0 %v368
        %2390 = vmatmul.mubr.bf16.gmra.mxu0 %v367
        %v2391 = vpop.f32.mrf.mxu0
        %v2392 = vadd.f32 %v2299, %v2391
        %v2393 = vpop.f32.mrf.mxu0
        %v2394 = vadd.f32 %v2301, %v2393
        %v2395 = vpop.f32.mrf.mxu0
        %v2396 = vadd.f32 %v2303, %v2395
        %v2397 = vpop.f32.mrf.mxu0
        %v2398 = vadd.f32 %v2305, %v2397
        %2399 = vmatprep.mubr.bf16.mxu0 %v374
        %2400 = vmatmul.mubr.bf16.gmra.mxu0 %v373
        %v2401 = vpop.f32.mrf.mxu0
        %v2402 = vadd.f32 %v2309, %v2401
        %v2403 = vpop.f32.mrf.mxu0
        %v2404 = vadd.f32 %v2311, %v2403
        %v2405 = vpop.f32.mrf.mxu0
        %v2406 = vadd.f32 %v2313, %v2405
        %v2407 = vpop.f32.mrf.mxu0
        %v2408 = vadd.f32 %v2315, %v2407
        %2409 = vmatprep.mubr.bf16.mxu0 %v380
        %2410 = vmatmul.mubr.bf16.gmra.mxu0 %v379
        %v2411 = vpop.f32.mrf.mxu0
        %v2412 = vadd.f32 %v2319, %v2411
        %v2413 = vpop.f32.mrf.mxu0
        %v2414 = vadd.f32 %v2321, %v2413
        %v2415 = vpop.f32.mrf.mxu0
        %v2416 = vadd.f32 %v2323, %v2415
        %v2417 = vpop.f32.mrf.mxu0
        %v2418 = vadd.f32 %v2325, %v2417
        %2419 = vdwg.mxu0
        %2420 = vmatprep.subr.bf16.mxu0 %v1610
        %2421 = vmatpush1.bf16.msra.mxu0 %v1609
        %2422 = vmatprep.subr.bf16.mxu0 %v1604
        %2423 = vmatpush1.bf16.msra.mxu0 %v1603
        %2424 = vmatprep.subr.bf16.mxu0 %v1598
        %2425 = vmatpush1.bf16.msra.mxu0 %v1597
        %2426 = vmatprep.subr.bf16.mxu0 %v1592
        %2427 = vmatpush1.bf16.msra.mxu0 %v1591
        %2428 = vmatprep.subr.bf16.mxu0 %v1586
        %2429 = vmatpush1.bf16.msra.mxu0 %v1585
        %2430 = vmatprep.subr.bf16.mxu0 %v1580
        %2431 = vmatpush1.bf16.msra.mxu0 %v1579
        %2432 = vmatprep.subr.bf16.mxu0 %v1574
        %2433 = vmatpush1.bf16.msra.mxu0 %v1573
        %2434 = vmatprep.subr.bf16.mxu0 %v1568
        %2435 = vmatpush1.bf16.msra.mxu0 %v1567
        %2436 = vmatprep.subr.bf16.mxu0 %v1658
        %2437 = vmatpush2.bf16.msra.mxu0 %v1657
        %2438 = vmatprep.subr.bf16.mxu0 %v1652
        %2439 = vmatpush2.bf16.msra.mxu0 %v1651
        %2440 = vmatprep.subr.bf16.mxu0 %v1646
        %2441 = vmatpush2.bf16.msra.mxu0 %v1645
        %2442 = vmatprep.subr.bf16.mxu0 %v1640
        %2443 = vmatpush2.bf16.msra.mxu0 %v1639
        %2444 = vmatprep.subr.bf16.mxu0 %v1634
        %2445 = vmatpush2.bf16.msra.mxu0 %v1633
        %2446 = vmatprep.subr.bf16.mxu0 %v1628
        %2447 = vmatpush2.bf16.msra.mxu0 %v1627
        %2448 = vmatprep.subr.bf16.mxu0 %v1622
        %2449 = vmatpush2.bf16.msra.mxu0 %v1621
        %2450 = vmatprep.subr.bf16.mxu0 %v1616
        %2451 = vmatpush2.bf16.msra.mxu0 %v1615
        %2452 = vmatprep.mubr.bf16.mxu0 %v346
        %2453 = vmatmul.mubr.bf16.gmra.mxu0 %v345
        %v2454 = vpop.f32.mrf.mxu0
        %v2455 = vadd.f32 %v682, %v2454
        %v2456 = vpop.f32.mrf.mxu0
        %v2457 = vadd.f32 %v686, %v2456
        %v2458 = vpop.f32.mrf.mxu0
        %v2459 = vadd.f32 %v682, %v2458
        %v2460 = vpop.f32.mrf.mxu0
        %v2461 = vadd.f32 %v686, %v2460
        %2462 = vmatprep.mubr.bf16.mxu0 %v352
        %2463 = vmatmul.mubr.bf16.gmra.mxu0 %v351
        %v2464 = vpop.f32.mrf.mxu0
        %v2465 = vadd.f32 %v682, %v2464
        %v2466 = vpop.f32.mrf.mxu0
        %v2467 = vadd.f32 %v686, %v2466
        %v2468 = vpop.f32.mrf.mxu0
        %v2469 = vadd.f32 %v682, %v2468
        %v2470 = vpop.f32.mrf.mxu0
        %v2471 = vadd.f32 %v686, %v2470
        %2472 = vmatprep.mubr.bf16.mxu0 %v358
        %2473 = vmatmul.mubr.bf16.gmra.mxu0 %v357
        %v2474 = vpop.f32.mrf.mxu0
        %v2475 = vadd.f32 %v682, %v2474
        %v2476 = vpop.f32.mrf.mxu0
        %v2477 = vadd.f32 %v686, %v2476
        %v2478 = vpop.f32.mrf.mxu0
        %v2479 = vadd.f32 %v682, %v2478
        %v2480 = vpop.f32.mrf.mxu0
        %v2481 = vadd.f32 %v686, %v2480
        %2482 = vmatprep.mubr.bf16.mxu0 %v364
        %2483 = vmatmul.mubr.bf16.gmra.mxu0 %v363
        %v2484 = vpop.f32.mrf.mxu0
        %v2485 = vadd.f32 %v682, %v2484
        %v2486 = vpop.f32.mrf.mxu0
        %v2487 = vadd.f32 %v686, %v2486
        %v2488 = vpop.f32.mrf.mxu0
        %v2489 = vadd.f32 %v682, %v2488
        %v2490 = vpop.f32.mrf.mxu0
        %v2491 = vadd.f32 %v686, %v2490
        %2492 = vmatprep.mubr.bf16.mxu0 %v370
        %2493 = vmatmul.mubr.bf16.gmra.mxu0 %v369
        %v2494 = vpop.f32.mrf.mxu0
        %v2495 = vadd.f32 %v682, %v2494
        %v2496 = vpop.f32.mrf.mxu0
        %v2497 = vadd.f32 %v686, %v2496
        %v2498 = vpop.f32.mrf.mxu0
        %v2499 = vadd.f32 %v682, %v2498
        %v2500 = vpop.f32.mrf.mxu0
        %v2501 = vadd.f32 %v686, %v2500
        %2502 = vmatprep.mubr.bf16.mxu0 %v376
        %2503 = vmatmul.mubr.bf16.gmra.mxu0 %v375
        %v2504 = vpop.f32.mrf.mxu0
        %v2505 = vadd.f32 %v682, %v2504
        %v2506 = vpop.f32.mrf.mxu0
        %v2507 = vadd.f32 %v686, %v2506
        %v2508 = vpop.f32.mrf.mxu0
        %v2509 = vadd.f32 %v682, %v2508
        %v2510 = vpop.f32.mrf.mxu0
        %v2511 = vadd.f32 %v686, %v2510
        %2512 = vdwg.mxu0
        %2513 = vmatprep.subr.bf16.mxu0 %v1706
        %2514 = vmatpush1.bf16.msra.mxu0 %v1705
        %2515 = vmatprep.subr.bf16.mxu0 %v1700
        %2516 = vmatpush1.bf16.msra.mxu0 %v1699
        %2517 = vmatprep.subr.bf16.mxu0 %v1694
        %2518 = vmatpush1.bf16.msra.mxu0 %v1693
        %2519 = vmatprep.subr.bf16.mxu0 %v1688
        %2520 = vmatpush1.bf16.msra.mxu0 %v1687
        %2521 = vmatprep.subr.bf16.mxu0 %v1682
        %2522 = vmatpush1.bf16.msra.mxu0 %v1681
        %2523 = vmatprep.subr.bf16.mxu0 %v1676
        %2524 = vmatpush1.bf16.msra.mxu0 %v1675
        %2525 = vmatprep.subr.bf16.mxu0 %v1670
        %2526 = vmatpush1.bf16.msra.mxu0 %v1669
        %2527 = vmatprep.subr.bf16.mxu0 %v1664
        %2528 = vmatpush1.bf16.msra.mxu0 %v1663
        %2529 = vmatprep.subr.bf16.mxu0 %v1754
        %2530 = vmatpush2.bf16.msra.mxu0 %v1753
        %2531 = vmatprep.subr.bf16.mxu0 %v1748
        %2532 = vmatpush2.bf16.msra.mxu0 %v1747
        %2533 = vmatprep.subr.bf16.mxu0 %v1742
        %2534 = vmatpush2.bf16.msra.mxu0 %v1741
        %2535 = vmatprep.subr.bf16.mxu0 %v1736
        %2536 = vmatpush2.bf16.msra.mxu0 %v1735
        %2537 = vmatprep.subr.bf16.mxu0 %v1730
        %2538 = vmatpush2.bf16.msra.mxu0 %v1729
        %2539 = vmatprep.subr.bf16.mxu0 %v1724
        %2540 = vmatpush2.bf16.msra.mxu0 %v1723
        %2541 = vmatprep.subr.bf16.mxu0 %v1718
        %2542 = vmatpush2.bf16.msra.mxu0 %v1717
        %2543 = vmatprep.subr.bf16.mxu0 %v1712
        %2544 = vmatpush2.bf16.msra.mxu0 %v1711
        %2545 = vmatprep.mubr.bf16.mxu0 %v348
        %2546 = vmatmul.mubr.bf16.gmra.mxu0 %v347
        %v2547 = vpop.f32.mrf.mxu0
        %v2548 = vadd.f32 %v2455, %v2547
        %v2549 = vpop.f32.mrf.mxu0
        %v2550 = vadd.f32 %v2457, %v2549
        %v2551 = vpop.f32.mrf.mxu0
        %v2552 = vadd.f32 %v2459, %v2551
        %v2553 = vpop.f32.mrf.mxu0
        %v2554 = vadd.f32 %v2461, %v2553
        %2555 = vmatprep.mubr.bf16.mxu0 %v354
        %2556 = vmatmul.mubr.bf16.gmra.mxu0 %v353
        %v2557 = vpop.f32.mrf.mxu0
        %v2558 = vadd.f32 %v2465, %v2557
        %v2559 = vpop.f32.mrf.mxu0
        %v2560 = vadd.f32 %v2467, %v2559
        %v2561 = vpop.f32.mrf.mxu0
        %v2562 = vadd.f32 %v2469, %v2561
        %v2563 = vpop.f32.mrf.mxu0
        %v2564 = vadd.f32 %v2471, %v2563
        %2565 = vmatprep.mubr.bf16.mxu0 %v360
        %2566 = vmatmul.mubr.bf16.gmra.mxu0 %v359
        %v2567 = vpop.f32.mrf.mxu0
        %v2568 = vadd.f32 %v2475, %v2567
        %v2569 = vpop.f32.mrf.mxu0
        %v2570 = vadd.f32 %v2477, %v2569
        %v2571 = vpop.f32.mrf.mxu0
        %v2572 = vadd.f32 %v2479, %v2571
        %v2573 = vpop.f32.mrf.mxu0
        %v2574 = vadd.f32 %v2481, %v2573
        %2575 = vmatprep.mubr.bf16.mxu0 %v366
        %2576 = vmatmul.mubr.bf16.gmra.mxu0 %v365
        %v2577 = vpop.f32.mrf.mxu0
        %v2578 = vadd.f32 %v2485, %v2577
        %v2579 = vpop.f32.mrf.mxu0
        %v2580 = vadd.f32 %v2487, %v2579
        %v2581 = vpop.f32.mrf.mxu0
        %v2582 = vadd.f32 %v2489, %v2581
        %v2583 = vpop.f32.mrf.mxu0
        %v2584 = vadd.f32 %v2491, %v2583
        %2585 = vmatprep.mubr.bf16.mxu0 %v372
        %2586 = vmatmul.mubr.bf16.gmra.mxu0 %v371
        %v2587 = vpop.f32.mrf.mxu0
        %v2588 = vadd.f32 %v2495, %v2587
        %v2589 = vpop.f32.mrf.mxu0
        %v2590 = vadd.f32 %v2497, %v2589
        %v2591 = vpop.f32.mrf.mxu0
        %v2592 = vadd.f32 %v2499, %v2591
        %v2593 = vpop.f32.mrf.mxu0
        %v2594 = vadd.f32 %v2501, %v2593
        %2595 = vmatprep.mubr.bf16.mxu0 %v378
        %2596 = vmatmul.mubr.bf16.gmra.mxu0 %v377
        %v2597 = vpop.f32.mrf.mxu0
        %v2598 = vadd.f32 %v2505, %v2597
        %v2599 = vpop.f32.mrf.mxu0
        %v2600 = vadd.f32 %v2507, %v2599
        %v2601 = vpop.f32.mrf.mxu0
        %v2602 = vadd.f32 %v2509, %v2601
        %v2603 = vpop.f32.mrf.mxu0
        %v2604 = vadd.f32 %v2511, %v2603
        %2605 = vdwg.mxu0
        %2606 = vmatprep.subr.bf16.mxu0 %v1802
        %2607 = vmatpush1.bf16.msra.mxu0 %v1801
        %2608 = vmatprep.subr.bf16.mxu0 %v1796
        %2609 = vmatpush1.bf16.msra.mxu0 %v1795
        %2610 = vmatprep.subr.bf16.mxu0 %v1790
        %2611 = vmatpush1.bf16.msra.mxu0 %v1789
        %2612 = vmatprep.subr.bf16.mxu0 %v1784
        %2613 = vmatpush1.bf16.msra.mxu0 %v1783
        %2614 = vmatprep.subr.bf16.mxu0 %v1778
        %2615 = vmatpush1.bf16.msra.mxu0 %v1777
        %2616 = vmatprep.subr.bf16.mxu0 %v1772
        %2617 = vmatpush1.bf16.msra.mxu0 %v1771
        %2618 = vmatprep.subr.bf16.mxu0 %v1766
        %2619 = vmatpush1.bf16.msra.mxu0 %v1765
        %2620 = vmatprep.subr.bf16.mxu0 %v1760
        %2621 = vmatpush1.bf16.msra.mxu0 %v1759
        %2622 = vmatprep.subr.bf16.mxu0 %v1850
        %2623 = vmatpush2.bf16.msra.mxu0 %v1849
        %2624 = vmatprep.subr.bf16.mxu0 %v1844
        %2625 = vmatpush2.bf16.msra.mxu0 %v1843
        %2626 = vmatprep.subr.bf16.mxu0 %v1838
        %2627 = vmatpush2.bf16.msra.mxu0 %v1837
        %2628 = vmatprep.subr.bf16.mxu0 %v1832
        %2629 = vmatpush2.bf16.msra.mxu0 %v1831
        %2630 = vmatprep.subr.bf16.mxu0 %v1826
        %2631 = vmatpush2.bf16.msra.mxu0 %v1825
        %2632 = vmatprep.subr.bf16.mxu0 %v1820
        %2633 = vmatpush2.bf16.msra.mxu0 %v1819
        %2634 = vmatprep.subr.bf16.mxu0 %v1814
        %2635 = vmatpush2.bf16.msra.mxu0 %v1813
        %2636 = vmatprep.subr.bf16.mxu0 %v1808
        %2637 = vmatpush2.bf16.msra.mxu0 %v1807
        %2638 = vmatprep.mubr.bf16.mxu0 %v350
        %2639 = vmatmul.mubr.bf16.gmra.mxu0 %v349
        %v2640 = vpop.f32.mrf.mxu0
        %v2641 = vadd.f32 %v2548, %v2640
        %v2642 = vpop.f32.mrf.mxu0
        %v2643 = vadd.f32 %v2550, %v2642
        %v2644 = vpop.f32.mrf.mxu0
        %v2645 = vadd.f32 %v2552, %v2644
        %v2646 = vpop.f32.mrf.mxu0
        %v2647 = vadd.f32 %v2554, %v2646
        %2648 = vmatprep.mubr.bf16.mxu0 %v356
        %2649 = vmatmul.mubr.bf16.gmra.mxu0 %v355
        %v2650 = vpop.f32.mrf.mxu0
        %v2651 = vadd.f32 %v2558, %v2650
        %v2652 = vpop.f32.mrf.mxu0
        %v2653 = vadd.f32 %v2560, %v2652
        %v2654 = vpop.f32.mrf.mxu0
        %v2655 = vadd.f32 %v2562, %v2654
        %v2656 = vpop.f32.mrf.mxu0
        %v2657 = vadd.f32 %v2564, %v2656
        %2658 = vmatprep.mubr.bf16.mxu0 %v362
        %2659 = vmatmul.mubr.bf16.gmra.mxu0 %v361
        %v2660 = vpop.f32.mrf.mxu0
        %v2661 = vadd.f32 %v2568, %v2660
        %v2662 = vpop.f32.mrf.mxu0
        %v2663 = vadd.f32 %v2570, %v2662
        %v2664 = vpop.f32.mrf.mxu0
        %v2665 = vadd.f32 %v2572, %v2664
        %v2666 = vpop.f32.mrf.mxu0
        %v2667 = vadd.f32 %v2574, %v2666
        %2668 = vmatprep.mubr.bf16.mxu0 %v368
        %2669 = vmatmul.mubr.bf16.gmra.mxu0 %v367
        %v2670 = vpop.f32.mrf.mxu0
        %v2671 = vadd.f32 %v2578, %v2670
        %v2672 = vpop.f32.mrf.mxu0
        %v2673 = vadd.f32 %v2580, %v2672
        %v2674 = vpop.f32.mrf.mxu0
        %v2675 = vadd.f32 %v2582, %v2674
        %v2676 = vpop.f32.mrf.mxu0
        %v2677 = vadd.f32 %v2584, %v2676
        %2678 = vmatprep.mubr.bf16.mxu0 %v374
        %2679 = vmatmul.mubr.bf16.gmra.mxu0 %v373
        %v2680 = vpop.f32.mrf.mxu0
        %v2681 = vadd.f32 %v2588, %v2680
        %v2682 = vpop.f32.mrf.mxu0
        %v2683 = vadd.f32 %v2590, %v2682
        %v2684 = vpop.f32.mrf.mxu0
        %v2685 = vadd.f32 %v2592, %v2684
        %v2686 = vpop.f32.mrf.mxu0
        %v2687 = vadd.f32 %v2594, %v2686
        %2688 = vmatprep.mubr.bf16.mxu0 %v380
        %2689 = vmatmul.mubr.bf16.gmra.mxu0 %v379
        %v2690 = vpop.f32.mrf.mxu0
        %v2691 = vadd.f32 %v2598, %v2690
        %v2692 = vpop.f32.mrf.mxu0
        %v2693 = vadd.f32 %v2600, %v2692
        %v2694 = vpop.f32.mrf.mxu0
        %v2695 = vadd.f32 %v2602, %v2694
        %v2696 = vpop.f32.mrf.mxu0
        %v2697 = vadd.f32 %v2604, %v2696
        %2698 = vdwg.mxu0
        %2699 = vmatprep.subr.bf16.mxu0 %v1612
        %2700 = vmatpush1.bf16.msra.mxu0 %v1611
        %2701 = vmatprep.subr.bf16.mxu0 %v1606
        %2702 = vmatpush1.bf16.msra.mxu0 %v1605
        %2703 = vmatprep.subr.bf16.mxu0 %v1600
        %2704 = vmatpush1.bf16.msra.mxu0 %v1599
        %2705 = vmatprep.subr.bf16.mxu0 %v1594
        %2706 = vmatpush1.bf16.msra.mxu0 %v1593
        %2707 = vmatprep.subr.bf16.mxu0 %v1588
        %2708 = vmatpush1.bf16.msra.mxu0 %v1587
        %2709 = vmatprep.subr.bf16.mxu0 %v1582
        %2710 = vmatpush1.bf16.msra.mxu0 %v1581
        %2711 = vmatprep.subr.bf16.mxu0 %v1576
        %2712 = vmatpush1.bf16.msra.mxu0 %v1575
        %2713 = vmatprep.subr.bf16.mxu0 %v1570
        %2714 = vmatpush1.bf16.msra.mxu0 %v1569
        %2715 = vmatprep.subr.bf16.mxu0 %v1660
        %2716 = vmatpush2.bf16.msra.mxu0 %v1659
        %2717 = vmatprep.subr.bf16.mxu0 %v1654
        %2718 = vmatpush2.bf16.msra.mxu0 %v1653
        %2719 = vmatprep.subr.bf16.mxu0 %v1648
        %2720 = vmatpush2.bf16.msra.mxu0 %v1647
        %2721 = vmatprep.subr.bf16.mxu0 %v1642
        %2722 = vmatpush2.bf16.msra.mxu0 %v1641
        %2723 = vmatprep.subr.bf16.mxu0 %v1636
        %2724 = vmatpush2.bf16.msra.mxu0 %v1635
        %2725 = vmatprep.subr.bf16.mxu0 %v1630
        %2726 = vmatpush2.bf16.msra.mxu0 %v1629
        %2727 = vmatprep.subr.bf16.mxu0 %v1624
        %2728 = vmatpush2.bf16.msra.mxu0 %v1623
        %2729 = vmatprep.subr.bf16.mxu0 %v1618
        %2730 = vmatpush2.bf16.msra.mxu0 %v1617
        %2731 = vmatprep.mubr.bf16.mxu0 %v346
        %2732 = vmatmul.mubr.bf16.gmra.mxu0 %v345
        %v2733 = vpop.f32.mrf.mxu0
        %v2734 = vadd.f32 %v690, %v2733
        %v2735 = vpop.f32.mrf.mxu0
        %v2736 = vadd.f32 %v694, %v2735
        %v2737 = vpop.f32.mrf.mxu0
        %v2738 = vadd.f32 %v690, %v2737
        %v2739 = vpop.f32.mrf.mxu0
        %v2740 = vadd.f32 %v694, %v2739
        %2741 = vmatprep.mubr.bf16.mxu0 %v352
        %2742 = vmatmul.mubr.bf16.gmra.mxu0 %v351
        %v2743 = vpop.f32.mrf.mxu0
        %v2744 = vadd.f32 %v690, %v2743
        %v2745 = vpop.f32.mrf.mxu0
        %v2746 = vadd.f32 %v694, %v2745
        %v2747 = vpop.f32.mrf.mxu0
        %v2748 = vadd.f32 %v690, %v2747
        %v2749 = vpop.f32.mrf.mxu0
        %v2750 = vadd.f32 %v694, %v2749
        %2751 = vmatprep.mubr.bf16.mxu0 %v358
        %2752 = vmatmul.mubr.bf16.gmra.mxu0 %v357
        %v2753 = vpop.f32.mrf.mxu0
        %v2754 = vadd.f32 %v690, %v2753
        %v2755 = vpop.f32.mrf.mxu0
        %v2756 = vadd.f32 %v694, %v2755
        %v2757 = vpop.f32.mrf.mxu0
        %v2758 = vadd.f32 %v690, %v2757
        %v2759 = vpop.f32.mrf.mxu0
        %v2760 = vadd.f32 %v694, %v2759
        %2761 = vmatprep.mubr.bf16.mxu0 %v364
        %2762 = vmatmul.mubr.bf16.gmra.mxu0 %v363
        %v2763 = vpop.f32.mrf.mxu0
        %v2764 = vadd.f32 %v690, %v2763
        %v2765 = vpop.f32.mrf.mxu0
        %v2766 = vadd.f32 %v694, %v2765
        %v2767 = vpop.f32.mrf.mxu0
        %v2768 = vadd.f32 %v690, %v2767
        %v2769 = vpop.f32.mrf.mxu0
        %v2770 = vadd.f32 %v694, %v2769
        %2771 = vmatprep.mubr.bf16.mxu0 %v370
        %2772 = vmatmul.mubr.bf16.gmra.mxu0 %v369
        %v2773 = vpop.f32.mrf.mxu0
        %v2774 = vadd.f32 %v690, %v2773
        %v2775 = vpop.f32.mrf.mxu0
        %v2776 = vadd.f32 %v694, %v2775
        %v2777 = vpop.f32.mrf.mxu0
        %v2778 = vadd.f32 %v690, %v2777
        %v2779 = vpop.f32.mrf.mxu0
        %v2780 = vadd.f32 %v694, %v2779
        %2781 = vmatprep.mubr.bf16.mxu0 %v376
        %2782 = vmatmul.mubr.bf16.gmra.mxu0 %v375
        %v2783 = vpop.f32.mrf.mxu0
        %v2784 = vadd.f32 %v690, %v2783
        %v2785 = vpop.f32.mrf.mxu0
        %v2786 = vadd.f32 %v694, %v2785
        %v2787 = vpop.f32.mrf.mxu0
        %v2788 = vadd.f32 %v690, %v2787
        %v2789 = vpop.f32.mrf.mxu0
        %v2790 = vadd.f32 %v694, %v2789
        %2791 = vdwg.mxu0
        %2792 = vmatprep.subr.bf16.mxu0 %v1708
        %2793 = vmatpush1.bf16.msra.mxu0 %v1707
        %2794 = vmatprep.subr.bf16.mxu0 %v1702
        %2795 = vmatpush1.bf16.msra.mxu0 %v1701
        %2796 = vmatprep.subr.bf16.mxu0 %v1696
        %2797 = vmatpush1.bf16.msra.mxu0 %v1695
        %2798 = vmatprep.subr.bf16.mxu0 %v1690
        %2799 = vmatpush1.bf16.msra.mxu0 %v1689
        %2800 = vmatprep.subr.bf16.mxu0 %v1684
        %2801 = vmatpush1.bf16.msra.mxu0 %v1683
        %2802 = vmatprep.subr.bf16.mxu0 %v1678
        %2803 = vmatpush1.bf16.msra.mxu0 %v1677
        %2804 = vmatprep.subr.bf16.mxu0 %v1672
        %2805 = vmatpush1.bf16.msra.mxu0 %v1671
        %2806 = vmatprep.subr.bf16.mxu0 %v1666
        %2807 = vmatpush1.bf16.msra.mxu0 %v1665
        %2808 = vmatprep.subr.bf16.mxu0 %v1756
        %2809 = vmatpush2.bf16.msra.mxu0 %v1755
        %2810 = vmatprep.subr.bf16.mxu0 %v1750
        %2811 = vmatpush2.bf16.msra.mxu0 %v1749
        %2812 = vmatprep.subr.bf16.mxu0 %v1744
        %2813 = vmatpush2.bf16.msra.mxu0 %v1743
        %2814 = vmatprep.subr.bf16.mxu0 %v1738
        %2815 = vmatpush2.bf16.msra.mxu0 %v1737
        %2816 = vmatprep.subr.bf16.mxu0 %v1732
        %2817 = vmatpush2.bf16.msra.mxu0 %v1731
        %2818 = vmatprep.subr.bf16.mxu0 %v1726
        %2819 = vmatpush2.bf16.msra.mxu0 %v1725
        %2820 = vmatprep.subr.bf16.mxu0 %v1720
        %2821 = vmatpush2.bf16.msra.mxu0 %v1719
        %2822 = vmatprep.subr.bf16.mxu0 %v1714
        %2823 = vmatpush2.bf16.msra.mxu0 %v1713
        %2824 = vmatprep.mubr.bf16.mxu0 %v348
        %2825 = vmatmul.mubr.bf16.gmra.mxu0 %v347
        %v2826 = vpop.f32.mrf.mxu0
        %v2827 = vadd.f32 %v2734, %v2826
        %v2828 = vpop.f32.mrf.mxu0
        %v2829 = vadd.f32 %v2736, %v2828
        %v2830 = vpop.f32.mrf.mxu0
        %v2831 = vadd.f32 %v2738, %v2830
        %v2832 = vpop.f32.mrf.mxu0
        %v2833 = vadd.f32 %v2740, %v2832
        %2834 = vmatprep.mubr.bf16.mxu0 %v354
        %2835 = vmatmul.mubr.bf16.gmra.mxu0 %v353
        %v2836 = vpop.f32.mrf.mxu0
        %v2837 = vadd.f32 %v2744, %v2836
        %v2838 = vpop.f32.mrf.mxu0
        %v2839 = vadd.f32 %v2746, %v2838
        %v2840 = vpop.f32.mrf.mxu0
        %v2841 = vadd.f32 %v2748, %v2840
        %v2842 = vpop.f32.mrf.mxu0
        %v2843 = vadd.f32 %v2750, %v2842
        %2844 = vmatprep.mubr.bf16.mxu0 %v360
        %2845 = vmatmul.mubr.bf16.gmra.mxu0 %v359
        %v2846 = vpop.f32.mrf.mxu0
        %v2847 = vadd.f32 %v2754, %v2846
        %v2848 = vpop.f32.mrf.mxu0
        %v2849 = vadd.f32 %v2756, %v2848
        %v2850 = vpop.f32.mrf.mxu0
        %v2851 = vadd.f32 %v2758, %v2850
        %v2852 = vpop.f32.mrf.mxu0
        %v2853 = vadd.f32 %v2760, %v2852
        %2854 = vmatprep.mubr.bf16.mxu0 %v366
        %2855 = vmatmul.mubr.bf16.gmra.mxu0 %v365
        %v2856 = vpop.f32.mrf.mxu0
        %v2857 = vadd.f32 %v2764, %v2856
        %v2858 = vpop.f32.mrf.mxu0
        %v2859 = vadd.f32 %v2766, %v2858
        %v2860 = vpop.f32.mrf.mxu0
        %v2861 = vadd.f32 %v2768, %v2860
        %v2862 = vpop.f32.mrf.mxu0
        %v2863 = vadd.f32 %v2770, %v2862
        %2864 = vmatprep.mubr.bf16.mxu0 %v372
        %2865 = vmatmul.mubr.bf16.gmra.mxu0 %v371
        %v2866 = vpop.f32.mrf.mxu0
        %v2867 = vadd.f32 %v2774, %v2866
        %v2868 = vpop.f32.mrf.mxu0
        %v2869 = vadd.f32 %v2776, %v2868
        %v2870 = vpop.f32.mrf.mxu0
        %v2871 = vadd.f32 %v2778, %v2870
        %v2872 = vpop.f32.mrf.mxu0
        %v2873 = vadd.f32 %v2780, %v2872
        %2874 = vmatprep.mubr.bf16.mxu0 %v378
        %2875 = vmatmul.mubr.bf16.gmra.mxu0 %v377
        %v2876 = vpop.f32.mrf.mxu0
        %v2877 = vadd.f32 %v2784, %v2876
        %v2878 = vpop.f32.mrf.mxu0
        %v2879 = vadd.f32 %v2786, %v2878
        %v2880 = vpop.f32.mrf.mxu0
        %v2881 = vadd.f32 %v2788, %v2880
        %v2882 = vpop.f32.mrf.mxu0
        %v2883 = vadd.f32 %v2790, %v2882
        %2884 = vdwg.mxu0
        %2885 = vmatprep.subr.bf16.mxu0 %v1804
        %2886 = vmatpush1.bf16.msra.mxu0 %v1803
        %2887 = vmatprep.subr.bf16.mxu0 %v1798
        %2888 = vmatpush1.bf16.msra.mxu0 %v1797
        %2889 = vmatprep.subr.bf16.mxu0 %v1792
        %2890 = vmatpush1.bf16.msra.mxu0 %v1791
        %2891 = vmatprep.subr.bf16.mxu0 %v1786
        %2892 = vmatpush1.bf16.msra.mxu0 %v1785
        %2893 = vmatprep.subr.bf16.mxu0 %v1780
        %2894 = vmatpush1.bf16.msra.mxu0 %v1779
        %2895 = vmatprep.subr.bf16.mxu0 %v1774
        %2896 = vmatpush1.bf16.msra.mxu0 %v1773
        %2897 = vmatprep.subr.bf16.mxu0 %v1768
        %2898 = vmatpush1.bf16.msra.mxu0 %v1767
        %2899 = vmatprep.subr.bf16.mxu0 %v1762
        %2900 = vmatpush1.bf16.msra.mxu0 %v1761
        %2901 = vmatprep.subr.bf16.mxu0 %v1852
        %2902 = vmatpush2.bf16.msra.mxu0 %v1851
        %2903 = vmatprep.subr.bf16.mxu0 %v1846
        %2904 = vmatpush2.bf16.msra.mxu0 %v1845
        %2905 = vmatprep.subr.bf16.mxu0 %v1840
        %2906 = vmatpush2.bf16.msra.mxu0 %v1839
        %2907 = vmatprep.subr.bf16.mxu0 %v1834
        %2908 = vmatpush2.bf16.msra.mxu0 %v1833
        %2909 = vmatprep.subr.bf16.mxu0 %v1828
        %2910 = vmatpush2.bf16.msra.mxu0 %v1827
        %2911 = vmatprep.subr.bf16.mxu0 %v1822
        %2912 = vmatpush2.bf16.msra.mxu0 %v1821
        %2913 = vmatprep.subr.bf16.mxu0 %v1816
        %2914 = vmatpush2.bf16.msra.mxu0 %v1815
        %2915 = vmatprep.subr.bf16.mxu0 %v1810
        %2916 = vmatpush2.bf16.msra.mxu0 %v1809
        %2917 = vmatprep.mubr.bf16.mxu0 %v350
        %2918 = vmatmul.mubr.bf16.gmra.mxu0 %v349
        %v2919 = vpop.f32.mrf.mxu0
        %v2920 = vadd.f32 %v2827, %v2919
        %v2921 = vpop.f32.mrf.mxu0
        %v2922 = vadd.f32 %v2829, %v2921
        %v2923 = vpop.f32.mrf.mxu0
        %v2924 = vadd.f32 %v2831, %v2923
        %v2925 = vpop.f32.mrf.mxu0
        %v2926 = vadd.f32 %v2833, %v2925
        %2927 = vmatprep.mubr.bf16.mxu0 %v356
        %2928 = vmatmul.mubr.bf16.gmra.mxu0 %v355
        %v2929 = vpop.f32.mrf.mxu0
        %v2930 = vadd.f32 %v2837, %v2929
        %v2931 = vpop.f32.mrf.mxu0
        %v2932 = vadd.f32 %v2839, %v2931
        %v2933 = vpop.f32.mrf.mxu0
        %v2934 = vadd.f32 %v2841, %v2933
        %v2935 = vpop.f32.mrf.mxu0
        %v2936 = vadd.f32 %v2843, %v2935
        %2937 = vmatprep.mubr.bf16.mxu0 %v362
        %2938 = vmatmul.mubr.bf16.gmra.mxu0 %v361
        %v2939 = vpop.f32.mrf.mxu0
        %v2940 = vadd.f32 %v2847, %v2939
        %v2941 = vpop.f32.mrf.mxu0
        %v2942 = vadd.f32 %v2849, %v2941
        %v2943 = vpop.f32.mrf.mxu0
        %v2944 = vadd.f32 %v2851, %v2943
        %v2945 = vpop.f32.mrf.mxu0
        %v2946 = vadd.f32 %v2853, %v2945
        %2947 = vmatprep.mubr.bf16.mxu0 %v368
        %2948 = vmatmul.mubr.bf16.gmra.mxu0 %v367
        %v2949 = vpop.f32.mrf.mxu0
        %v2950 = vadd.f32 %v2857, %v2949
        %v2951 = vpop.f32.mrf.mxu0
        %v2952 = vadd.f32 %v2859, %v2951
        %v2953 = vpop.f32.mrf.mxu0
        %v2954 = vadd.f32 %v2861, %v2953
        %v2955 = vpop.f32.mrf.mxu0
        %v2956 = vadd.f32 %v2863, %v2955
        %2957 = vmatprep.mubr.bf16.mxu0 %v374
        %2958 = vmatmul.mubr.bf16.gmra.mxu0 %v373
        %v2959 = vpop.f32.mrf.mxu0
        %v2960 = vadd.f32 %v2867, %v2959
        %v2961 = vpop.f32.mrf.mxu0
        %v2962 = vadd.f32 %v2869, %v2961
        %v2963 = vpop.f32.mrf.mxu0
        %v2964 = vadd.f32 %v2871, %v2963
        %v2965 = vpop.f32.mrf.mxu0
        %v2966 = vadd.f32 %v2873, %v2965
        %2967 = vmatprep.mubr.bf16.mxu0 %v380
        %2968 = vmatmul.mubr.bf16.gmra.mxu0 %v379
        %v2969 = vpop.f32.mrf.mxu0
        %v2970 = vadd.f32 %v2877, %v2969
        %v2971 = vpop.f32.mrf.mxu0
        %v2972 = vadd.f32 %v2879, %v2971
        %v2973 = vpop.f32.mrf.mxu0
        %v2974 = vadd.f32 %v2881, %v2973
        %v2975 = vpop.f32.mrf.mxu0
        %v2976 = vadd.f32 %v2883, %v2975
        %2977 = vdwg.mxu0
        %v2978 = vld [vmem:[%s240] sm:$0xff]
        %v2979 = vld [vmem:[%s240 + $0x8] sm:$0xff]
        %v2980 = vld [vmem:[%s240 + $0x10] sm:$0xff]
        %v2981 = vld [vmem:[%s240 + $0x18] sm:$0xff]
        %v2982 = vld [vmem:[%s240 + $0x20] sm:$0xff]
        %v2983 = vld [vmem:[%s240 + $0x28] sm:$0xff]
        %v2984 = vld [vmem:[%s240 + $0x30] sm:$0xff]
        %v2985 = vld [vmem:[%s240 + $0x38] sm:$0xff]
        %v2986 = vld [vmem:[%s240 + $0x40] sm:$0xff]
        %v2987 = vld [vmem:[%s240 + $0x48] sm:$0xff]
        %v2988 = vld [vmem:[%s240 + $0x50] sm:$0xff]
        %v2989 = vld [vmem:[%s240 + $0x58] sm:$0xff]
        %v2990 = vld [vmem:[%s240 + $0x60] sm:$0xff]
        %v2991 = vld [vmem:[%s240 + $0x68] sm:$0xff]
        %v2992 = vld [vmem:[%s240 + $0x70] sm:$0xff]
        %v2993 = vld [vmem:[%s240 + $0x78] sm:$0xff]
        %v2994 = vld [vmem:[%s240 + $0x80] sm:$0xff]
        %v2995 = vld [vmem:[%s240 + $0x88] sm:$0xff]
        %v2996 = vld [vmem:[%s240 + $0x90] sm:$0xff]
        %v2997 = vld [vmem:[%s240 + $0x98] sm:$0xff]
        %v2998 = vld [vmem:[%s240 + $0xa0] sm:$0xff]
        %v2999 = vld [vmem:[%s240 + $0xa8] sm:$0xff]
        %v3000 = vld [vmem:[%s240 + $0xb0] sm:$0xff]
        %v3001 = vld [vmem:[%s240 + $0xb8] sm:$0xff]
        %v3002 = vld [vmem:[%s240 + $0xc0] sm:$0xff]
        %v3003 = vld [vmem:[%s240 + $0xc8] sm:$0xff]
        %v3004 = vld [vmem:[%s240 + $0xd0] sm:$0xff]
        %v3005 = vld [vmem:[%s240 + $0xd8] sm:$0xff]
        %v3006 = vld [vmem:[%s240 + $0xe0] sm:$0xff]
        %v3007 = vld [vmem:[%s240 + $0xe8] sm:$0xff]
        %v3008 = vld [vmem:[%s240 + $0xf0] sm:$0xff]
        %v3009 = vld [vmem:[%s240 + $0xf8] sm:$0xff]
        %v3010 = vld [vmem:[%s240 + $0x100] sm:$0xff]
        %v3011 = vld [vmem:[%s240 + $0x108] sm:$0xff]
        %v3012 = vld [vmem:[%s240 + $0x110] sm:$0xff]
        %v3013 = vld [vmem:[%s240 + $0x118] sm:$0xff]
        %v3014 = vld [vmem:[%s240 + $0x120] sm:$0xff]
        %v3015 = vld [vmem:[%s240 + $0x128] sm:$0xff]
        %v3016 = vld [vmem:[%s240 + $0x130] sm:$0xff]
        %v3017 = vld [vmem:[%s240 + $0x138] sm:$0xff]
        %v3018 = vld [vmem:[%s240 + $0x140] sm:$0xff]
        %v3019 = vld [vmem:[%s240 + $0x148] sm:$0xff]
        %v3020 = vld [vmem:[%s240 + $0x150] sm:$0xff]
        %v3021 = vld [vmem:[%s240 + $0x158] sm:$0xff]
        %v3022 = vld [vmem:[%s240 + $0x160] sm:$0xff]
        %v3023 = vld [vmem:[%s240 + $0x168] sm:$0xff]
        %v3024 = vld [vmem:[%s240 + $0x170] sm:$0xff]
        %v3025 = vld [vmem:[%s240 + $0x178] sm:$0xff]
        %v3026 = vld [vmem:[%s240 + $0x180] sm:$0xff]
        %v3027 = vld [vmem:[%s240 + $0x188] sm:$0xff]
        %v3028 = vld [vmem:[%s240 + $0x190] sm:$0xff]
        %v3029 = vld [vmem:[%s240 + $0x198] sm:$0xff]
        %v3030 = vld [vmem:[%s240 + $0x1a0] sm:$0xff]
        %v3031 = vld [vmem:[%s240 + $0x1a8] sm:$0xff]
        %v3032 = vld [vmem:[%s240 + $0x1b0] sm:$0xff]
        %v3033 = vld [vmem:[%s240 + $0x1b8] sm:$0xff]
        %v3034 = vld [vmem:[%s240 + $0x1c0] sm:$0xff]
        %v3035 = vld [vmem:[%s240 + $0x1c8] sm:$0xff]
        %v3036 = vld [vmem:[%s240 + $0x1d0] sm:$0xff]
        %v3037 = vld [vmem:[%s240 + $0x1d8] sm:$0xff]
        %v3038 = vld [vmem:[%s240 + $0x1e0] sm:$0xff]
        %v3039 = vld [vmem:[%s240 + $0x1e8] sm:$0xff]
        %v3040 = vld [vmem:[%s240 + $0x1f0] sm:$0xff]
        %v3041 = vld [vmem:[%s240 + $0x1f8] sm:$0xff]
        %v3042 = vld [vmem:[%s240 + $0x200] sm:$0xff]
        %v3043 = vld [vmem:[%s240 + $0x208] sm:$0xff]
        %v3044 = vld [vmem:[%s240 + $0x210] sm:$0xff]
        %v3045 = vld [vmem:[%s240 + $0x218] sm:$0xff]
        %v3046 = vld [vmem:[%s240 + $0x220] sm:$0xff]
        %v3047 = vld [vmem:[%s240 + $0x228] sm:$0xff]
        %v3048 = vld [vmem:[%s240 + $0x230] sm:$0xff]
        %v3049 = vld [vmem:[%s240 + $0x238] sm:$0xff]
        %v3050 = vadd.f32 %v2362, %v2978
        %v3051 = vadd.f32 %v2364, %v2979
        %v3052 = vadd.f32 %v2641, %v2980
        %v3053 = vadd.f32 %v2643, %v2981
        %v3054 = vadd.f32 %v2920, %v2982
        %v3055 = vadd.f32 %v2922, %v2983
        %v3056 = vadd.f32 %v2366, %v2984
        %v3057 = vadd.f32 %v2368, %v2985
        %v3058 = vadd.f32 %v2645, %v2986
        %v3059 = vadd.f32 %v2647, %v2987
        %v3060 = vadd.f32 %v2924, %v2988
        %v3061 = vadd.f32 %v2926, %v2989
        %v3062 = vadd.f32 %v2372, %v2990
        %v3063 = vadd.f32 %v2374, %v2991
        %v3064 = vadd.f32 %v2651, %v2992
        %v3065 = vadd.f32 %v2653, %v2993
        %v3066 = vadd.f32 %v2930, %v2994
        %v3067 = vadd.f32 %v2932, %v2995
        %v3068 = vadd.f32 %v2376, %v2996
        %v3069 = vadd.f32 %v2378, %v2997
        %v3070 = vadd.f32 %v2655, %v2998
        %v3071 = vadd.f32 %v2657, %v2999
        %v3072 = vadd.f32 %v2934, %v3000
        %v3073 = vadd.f32 %v2936, %v3001
        %v3074 = vadd.f32 %v2382, %v3002
        %v3075 = vadd.f32 %v2384, %v3003
        %v3076 = vadd.f32 %v2661, %v3004
        %v3077 = vadd.f32 %v2663, %v3005
        %v3078 = vadd.f32 %v2940, %v3006
        %v3079 = vadd.f32 %v2942, %v3007
        %v3080 = vadd.f32 %v2386, %v3008
        %v3081 = vadd.f32 %v2388, %v3009
        %v3082 = vadd.f32 %v2665, %v3010
        %v3083 = vadd.f32 %v2667, %v3011
        %v3084 = vadd.f32 %v2944, %v3012
        %v3085 = vadd.f32 %v2946, %v3013
        %v3086 = vadd.f32 %v2392, %v3014
        %v3087 = vadd.f32 %v2394, %v3015
        %v3088 = vadd.f32 %v2671, %v3016
        %v3089 = vadd.f32 %v2673, %v3017
        %v3090 = vadd.f32 %v2950, %v3018
        %v3091 = vadd.f32 %v2952, %v3019
        %v3092 = vadd.f32 %v2396, %v3020
        %v3093 = vadd.f32 %v2398, %v3021
        %v3094 = vadd.f32 %v2675, %v3022
        %v3095 = vadd.f32 %v2677, %v3023
        %v3096 = vadd.f32 %v2954, %v3024
        %v3097 = vadd.f32 %v2956, %v3025
        %v3098 = vadd.f32 %v2402, %v3026
        %v3099 = vadd.f32 %v2404, %v3027
        %v3100 = vadd.f32 %v2681, %v3028
        %v3101 = vadd.f32 %v2683, %v3029
        %v3102 = vadd.f32 %v2960, %v3030
        %v3103 = vadd.f32 %v2962, %v3031
        %v3104 = vadd.f32 %v2406, %v3032
        %v3105 = vadd.f32 %v2408, %v3033
        %v3106 = vadd.f32 %v2685, %v3034
        %v3107 = vadd.f32 %v2687, %v3035
        %v3108 = vadd.f32 %v2964, %v3036
        %v3109 = vadd.f32 %v2966, %v3037
        %v3110 = vadd.f32 %v2412, %v3038
        %v3111 = vadd.f32 %v2414, %v3039
        %v3112 = vadd.f32 %v2691, %v3040
        %v3113 = vadd.f32 %v2693, %v3041
        %v3114 = vadd.f32 %v2970, %v3042
        %v3115 = vadd.f32 %v2972, %v3043
        %v3116 = vadd.f32 %v2416, %v3044
        %v3117 = vadd.f32 %v2418, %v3045
        %v3118 = vadd.f32 %v2695, %v3046
        %v3119 = vadd.f32 %v2697, %v3047
        %v3120 = vadd.f32 %v2974, %v3048
        %v3121 = vadd.f32 %v2976, %v3049
        %3122 = vst [vmem:[%s269] sm:$0xff] %v3050
        %3123 = vst [vmem:[%s269 + $0x8] sm:$0xff] %v3051
        %3124 = vst [vmem:[%s269 + $0x10] sm:$0xff] %v3052
        %3125 = vst [vmem:[%s269 + $0x18] sm:$0xff] %v3053
        %3126 = vst [vmem:[%s269 + $0x20] sm:$0xff] %v3054
        %3127 = vst [vmem:[%s269 + $0x28] sm:$0xff] %v3055
        %3128 = vst [vmem:[%s269 + $0x30] sm:$0xff] %v3056
        %3129 = vst [vmem:[%s269 + $0x38] sm:$0xff] %v3057
        %3130 = vst [vmem:[%s269 + $0x40] sm:$0xff] %v3058
        %3131 = vst [vmem:[%s269 + $0x48] sm:$0xff] %v3059
        %3132 = vst [vmem:[%s269 + $0x50] sm:$0xff] %v3060
        %3133 = vst [vmem:[%s269 + $0x58] sm:$0xff] %v3061
        %3134 = vst [vmem:[%s269 + $0x60] sm:$0xff] %v3062
        %3135 = vst [vmem:[%s269 + $0x68] sm:$0xff] %v3063
        %3136 = vst [vmem:[%s269 + $0x70] sm:$0xff] %v3064
        %3137 = vst [vmem:[%s269 + $0x78] sm:$0xff] %v3065
        %3138 = vst [vmem:[%s269 + $0x80] sm:$0xff] %v3066
        %3139 = vst [vmem:[%s269 + $0x88] sm:$0xff] %v3067
        %3140 = vst [vmem:[%s269 + $0x90] sm:$0xff] %v3068
        %3141 = vst [vmem:[%s269 + $0x98] sm:$0xff] %v3069
        %3142 = vst [vmem:[%s269 + $0xa0] sm:$0xff] %v3070
        %3143 = vst [vmem:[%s269 + $0xa8] sm:$0xff] %v3071
        %3144 = vst [vmem:[%s269 + $0xb0] sm:$0xff] %v3072
        %3145 = vst [vmem:[%s269 + $0xb8] sm:$0xff] %v3073
        %3146 = vst [vmem:[%s269 + $0xc0] sm:$0xff] %v3074
        %3147 = vst [vmem:[%s269 + $0xc8] sm:$0xff] %v3075
        %3148 = vst [vmem:[%s269 + $0xd0] sm:$0xff] %v3076
        %3149 = vst [vmem:[%s269 + $0xd8] sm:$0xff] %v3077
        %3150 = vst [vmem:[%s269 + $0xe0] sm:$0xff] %v3078
        %3151 = vst [vmem:[%s269 + $0xe8] sm:$0xff] %v3079
        %3152 = vst [vmem:[%s269 + $0xf0] sm:$0xff] %v3080
        %3153 = vst [vmem:[%s269 + $0xf8] sm:$0xff] %v3081
        %3154 = vst [vmem:[%s269 + $0x100] sm:$0xff] %v3082
        %3155 = vst [vmem:[%s269 + $0x108] sm:$0xff] %v3083
        %3156 = vst [vmem:[%s269 + $0x110] sm:$0xff] %v3084
        %3157 = vst [vmem:[%s269 + $0x118] sm:$0xff] %v3085
        %3158 = vst [vmem:[%s269 + $0x120] sm:$0xff] %v3086
        %3159 = vst [vmem:[%s269 + $0x128] sm:$0xff] %v3087
        %3160 = vst [vmem:[%s269 + $0x130] sm:$0xff] %v3088
        %3161 = vst [vmem:[%s269 + $0x138] sm:$0xff] %v3089
        %3162 = vst [vmem:[%s269 + $0x140] sm:$0xff] %v3090
        %3163 = vst [vmem:[%s269 + $0x148] sm:$0xff] %v3091
        %3164 = vst [vmem:[%s269 + $0x150] sm:$0xff] %v3092
        %3165 = vst [vmem:[%s269 + $0x158] sm:$0xff] %v3093
        %3166 = vst [vmem:[%s269 + $0x160] sm:$0xff] %v3094
        %3167 = vst [vmem:[%s269 + $0x168] sm:$0xff] %v3095
        %3168 = vst [vmem:[%s269 + $0x170] sm:$0xff] %v3096
        %3169 = vst [vmem:[%s269 + $0x178] sm:$0xff] %v3097
        %3170 = vst [vmem:[%s269 + $0x180] sm:$0xff] %v3098
        %3171 = vst [vmem:[%s269 + $0x188] sm:$0xff] %v3099
        %3172 = vst [vmem:[%s269 + $0x190] sm:$0xff] %v3100
        %3173 = vst [vmem:[%s269 + $0x198] sm:$0xff] %v3101
        %3174 = vst [vmem:[%s269 + $0x1a0] sm:$0xff] %v3102
        %3175 = vst [vmem:[%s269 + $0x1a8] sm:$0xff] %v3103
        %3176 = vst [vmem:[%s269 + $0x1b0] sm:$0xff] %v3104
        %3177 = vst [vmem:[%s269 + $0x1b8] sm:$0xff] %v3105
        %3178 = vst [vmem:[%s269 + $0x1c0] sm:$0xff] %v3106
        %3179 = vst [vmem:[%s269 + $0x1c8] sm:$0xff] %v3107
        %3180 = vst [vmem:[%s269 + $0x1d0] sm:$0xff] %v3108
        %3181 = vst [vmem:[%s269 + $0x1d8] sm:$0xff] %v3109
        %3182 = vst [vmem:[%s269 + $0x1e0] sm:$0xff] %v3110
        %3183 = vst [vmem:[%s269 + $0x1e8] sm:$0xff] %v3111
        %3184 = vst [vmem:[%s269 + $0x1f0] sm:$0xff] %v3112
        %3185 = vst [vmem:[%s269 + $0x1f8] sm:$0xff] %v3113
        %3186 = vst [vmem:[%s269 + $0x200] sm:$0xff] %v3114
        %3187 = vst [vmem:[%s269 + $0x208] sm:$0xff] %v3115
        %3188 = vst [vmem:[%s269 + $0x210] sm:$0xff] %v3116
        %3189 = vst [vmem:[%s269 + $0x218] sm:$0xff] %v3117
        %3190 = vst [vmem:[%s269 + $0x220] sm:$0xff] %v3118
        %3191 = vst [vmem:[%s269 + $0x228] sm:$0xff] %v3119
        %3192 = vst [vmem:[%s269 + $0x230] sm:$0xff] %v3120
        %3193 = vst [vmem:[%s269 + $0x238] sm:$0xff] %v3121
        %s3194 = sand.u32 %s124, 1
        %s3195 = scalar_lea.sflag [#allocation4], %s3194
        %s3196 = sand.u32 %s124, 1
        %s3197 = smul.addr %s3196, 576
        %s3198 = scalar_lea.vmem [#allocation8], %s3197
        // Predicated region
        $region49: #{linear_dropout_add.1} parent=35 // pred_check
          %p3199 = pneg %p134
        $region50: #{linear_dropout_add.1} parent=35 // pred_check_branch
          %3201 = sbr.rel (%p3199) target = $region52
        $region51: #{linear_dropout_add.1} parent=35 // pred_region
          %s3202 = smul.u32 12, %s22
          %s3204 = ssub.s32 9216, 9216
          %3205 = vsyncadd %s3195, %s3204
          %s3206 = smul.addr %s3202, 6
          %s3207 = smul.addr %s3206, 128
          %s3208 = scalar_lea.hbm %s4, %s3207
          %s3209 = sshll.u32 %s3198, 4
          %s3210 = int_to_ptr.vmem [resolvable:$true] %s3209
          %3215 = dma.vmem_to_hbm [thread:$0]  %s3210, 9216, %s3208, %s3195, 768, 768, 48
        $region52: #{linear_dropout_add.1} parent=35 // pred_fallthru
          _
      $region36: #{linear_dropout_add.1} parent=5 // pred_fallthru
        _
      %p3216 = scmp.le.s32.totalorder 2, %s17
      // Predicated region
      $region53: #{linear_dropout_add.1} parent=5 // pred_check
        %p3217 = pneg %p3216
      $region54: #{linear_dropout_add.1} parent=5 // pred_check_branch
        %3219 = sbr.rel (%p3217) target = $region56
      $region55: #{linear_dropout_add.1} parent=5 // pred_region
        %s3220 = ssub.s32 %s17, 2
        // Predicated region
        $region57: #{linear_dropout_add.1} parent=55 // pred_check
          %p3221 = pneg %p140
        $region58: #{linear_dropout_add.1} parent=55 // pred_check_branch
          %3223 = sbr.rel (%p3221) target = $region60
        $region59: #{linear_dropout_add.1} parent=55 // pred_region
          %s3224 = sand.u32 %s125, 1
          %s3225 = scalar_lea.sflag [#allocation4], %s3224
          %s3226 = sand.u32 %s125, 1
          %s3227 = smul.addr %s3226, 576
          %s3228 = scalar_lea.vmem [#allocation8], %s3227
          %3229 = dma.done %s3225, 9216
        $region60: #{linear_dropout_add.1} parent=55 // pred_fallthru
          _
      $region56: #{linear_dropout_add.1} parent=5 // pred_fallthru
        _
    $region6: #{linear_dropout_add.1} parent=1 // loop_footer
      %s21 = sadd.s32 1, %s17
    $region7: #{linear_dropout_add.1} parent=1 // loop_footer_branch
      %16 = sbr.rel target = $region3
    $region8: #{linear_dropout_add.1} parent=1 // loop_exit
      _
    %3230 = vsyncpa [#allocation3], 1
    %s3231 = scalar_lea.sflag [#allocation3], 1
    %3232 = vsyncpa %s3231, 1
    %3233 = vsyncpa [#allocation6], 1
    %3234 = vsyncpa [#allocation4], 1
    %s3235 = scalar_lea.sflag [#allocation4], 1
    %3236 = vsyncpa %s3235, 1

</llo_original>
